<compile_context>
chip_gen: v7x
topology: tpu7x:2x2x1
jax: 0.10.0
libtpu: 0.0.40
codegen_flags: <defaults>
</compile_context>

<pallas_src>
import jax
import jax.numpy as jnp
import numpy as np
from jax import lax
from jax.experimental import pallas as pl
from jax.experimental.pallas import tpu as pltpu

_LANE = 128


def _round_up(v, m):
    return ((v + m - 1) // m) * m


def _make_rk4_kernel(nt, tm):
    """Build the RK4 kernel for a fixed (static) number of row tiles nt of size tm."""

    def kernel(m_hbm, y0_ref, o_ref, a_vmem, k1_vmem, rhs_a, rhs_b, copy_sem):
        i = pl.program_id(0)
        third = jnp.float32(1.0 / 3.0)

        def slab_copy(j, slot):
            # DMA row slab j of M (HBM) straight into its resident VMEM slot.
            return pltpu.make_async_copy(
                m_hbm.at[pl.ds(j * tm, tm), :], a_vmem.at[j], copy_sem.at[slot]
            )

        @pl.when(i == 0)
        def _():
            # Cast y0 -> bf16 exactly once (stage-1 MXU RHS) and kick off slab 0.
            rhs_a[...] = y0_ref[...].astype(jnp.bfloat16)
            slab_copy(0, 0).start()

        # Prefetch the next row slab of M while the MXU works on this one
        # (no BlockSpec staging buffer, no VMEM->VMEM copy).
        @pl.when(i + 1 < nt)
        def _():
            slab_copy(i + 1, (i + 1) % 2).start()

        slab_copy(i, i % 2).wait()

        # Stage 1 rows for this slab: k1 = M_rows @ y0.  Stage-2 RHS rows
        # (y0 + k1/3, bf16) are built on the fly while the phase is HBM-bound.
        rows = pl.ds(pl.multiple_of(i * tm, tm), tm)
        k1_rows = jnp.dot(a_vmem[i], rhs_a[...], preferred_element_type=jnp.float32)
        k1_vmem[rows, :] = k1_rows
        rhs_b[rows, :] = (y0_ref[rows, :] + k1_rows * third).astype(jnp.bfloat16)

        @pl.when(i == nt - 1)
        def _finalize():
            unroll = min(nt, 8)

            def stage(rhs_ref, epilogue):
                # k_rows = M_rows_j @ rhs, combined per row tile (no concatenates,
                # no full-matrix k scratch).
                def body(j, carry):
                    r = pl.ds(pl.multiple_of(j * tm, tm), tm)
                    k_rows = jnp.dot(
                        a_vmem[j], rhs_ref[...], preferred_element_type=jnp.float32
                    )
                    epilogue(r, k_rows)
                    return carry

                lax.fori_loop(0, nt, body, 0, unroll=unroll)

            def stage2_epi(r, k2):
                k1 = k1_vmem[r, :]
                y0 = y0_ref[r, :]
                o_ref[r, :] = k1 + jnp.float32(3.0) * k2              # O  = k1 + 3*k2
                k1_vmem[r, :] = k1 - k2                               # S  = k1 - k2
                rhs_a[r, :] = (y0 + (k2 - k1 * third)).astype(jnp.bfloat16)  # rhs3

            def stage3_epi(r, k3):
                y0 = y0_ref[r, :]
                o_ref[r, :] = o_ref[r, :] + jnp.float32(3.0) * k3     # O += 3*k3
                rhs_b[r, :] = (y0 + (k1_vmem[r, :] + k3)).astype(jnp.bfloat16)  # rhs4

            def stage4_epi(r, k4):
                y0 = y0_ref[r, :]
                # h = 1 (t = [0, 1]); combine kept in f32 (no bf16 VPU on v5e).
                o_ref[r, :] = y0 + (o_ref[r, :] + k4) * jnp.float32(0.125)

            stage(rhs_b, stage2_epi)   # k2 from rhs2 (ping)
            stage(rhs_a, stage3_epi)   # k3 from rhs3 (pong)
            stage(rhs_b, stage4_epi)   # k4 from rhs4 (ping)

    return kernel


def rk4_attention_step(m_op, y0):
    """Pallas RK4 integration of dy/dt = M @ y (M = A - I), M VMEM-resident, read once."""
    n_pad, d_pad = y0.shape
    assert m_op.shape == (n_pad, n_pad)
    m_bytes = jnp.dtype(m_op.dtype).itemsize

    # Row-tile size: lane/MXU aligned and dividing n_pad (n_pad is a multiple of 128).
    if n_pad % 512 == 0 and n_pad >= 4096:
        tm = 512
    elif n_pad % 256 == 0 and n_pad >= 1024:
        tm = 256
    else:
        tm = 128
    nt = n_pad // tm

    # Generation-aware VMEM budget (v5e/v6e: 128 MiB parts, v7x: 64 MiB per core).
    try:
        vmem_cap = int(pltpu.get_tpu_info().vmem_capacity_bytes)
    except Exception:
        vmem_cap = 64 << 20  # conservative fallback
    usable = min(vmem_cap - (8 << 20), (7 * vmem_cap) // 8)

    vmem_needed = (
        n_pad * n_pad * m_bytes          # resident M (read from HBM exactly once)
        + n_pad * d_pad * 4              # k1 / (k1 - k2) scratch (f32)
        + 2 * n_pad * d_pad * 2          # two bf16 stage-RHS ping/pong buffers
        + 2 * 2 * n_pad * d_pad * 4      # y0 input + output pipeline blocks (f32)
        + (2 << 20)                      # compiler-internal headroom
    )
    if vmem_needed > usable:
        # TODO(synk): fall back to a streamed 4x-read pipeline (and/or fp8 M /
        # dual-TensorCore row split on v7x) instead of failing.
        raise ValueError(
            f"Operator {n_pad}x{n_pad} ({m_op.dtype}) needs ~{vmem_needed >> 20} MiB VMEM "
            f"but only ~{usable >> 20} MiB is usable on this TPU generation."
        )
    vmem_limit = int(min(usable, max(32 << 20, vmem_needed + (4 << 20))))

    kernel = _make_rk4_kernel(nt, tm)
    return pl.pallas_call(
        kernel,
        out_shape=jax.ShapeDtypeStruct((n_pad, d_pad), jnp.float32),
        grid=(nt,),
        in_specs=[
            pl.BlockSpec(memory_space=pl.ANY),                # M stays in HBM; manual DMA
            pl.BlockSpec((n_pad, d_pad), lambda i: (0, 0)),   # y0 resident (revisited)
        ],
        out_specs=pl.BlockSpec((n_pad, d_pad), lambda i: (0, 0)),
        scratch_shapes=[
            pltpu.VMEM((nt, tm, n_pad), m_op.dtype),          # resident copy of M
            pltpu.VMEM((n_pad, d_pad), jnp.float32),          # k1 / (k1 - k2)
            pltpu.VMEM((n_pad, d_pad), jnp.bfloat16),         # stage RHS (pong)
            pltpu.VMEM((n_pad, d_pad), jnp.bfloat16),         # stage RHS (ping)
            pltpu.SemaphoreType.DMA((2,)),                    # slab DMA semaphores
        ],
        compiler_params=pltpu.CompilerParams(
            # The row-stream axis carries the resident scratch + finalize, so it is
            # sequential by construction.
            dimension_semantics=("arbitrary",),
            vmem_limit_bytes=vmem_limit,
        ),
        cost_estimate=pl.CostEstimate(
            flops=8 * n_pad * n_pad * d_pad,                  # 4 stage matmuls
            transcendentals=0,
            bytes_accessed=n_pad * n_pad * m_bytes + 2 * n_pad * d_pad * 4,
        ),
    )(m_op, y0)


def _assemble_diffusion_operator(x, edge_index, att, opt, num_nodes, training):
    """Attention sampling / renormalisation (HardAttODEblock.forward) and dense
    assembly of the padded ODE operator M = A - I (bf16) and state y0 (f32)."""
    mean_att = att.mean(axis=1)                                  # (E,)
    if training:
        q = 1.0 - opt["att_samp_pct"]
        threshold = jnp.quantile(mean_att, q)                    # torch.quantile (linear)
        mask = mean_att > threshold
        kept = jnp.where(mask, mean_att, jnp.float32(0.0))
        norm_idx = edge_index[opt["attention_norm_idx"]]
        att_sums = jnp.zeros((num_nodes,), jnp.float32).at[norm_idx].add(kept)
        attention = kept / (att_sums[norm_idx] + 1e-16)          # renormalise_attention
    else:
        attention = mean_att

    n, d = num_nodes, x.shape[1]
    n_pad = _round_up(max(n, _LANE), _LANE)     # contraction dim: lane/MXU aligned
    d_pad = _round_up(max(d, _LANE), _LANE)     # lane-dense stores (D=32 -> 128)

    diag = jnp.arange(n)
    m = (
        jnp.zeros((n_pad, n_pad), jnp.float32)
        .at[edge_index[0], edge_index[1]].add(attention)         # A (spmm convention)
        .at[diag, diag].add(-1.0)                                # M = A - I
    )
    # TODO(synk): fp8 (v7x) / int8+scale (v5e/v6e) operator would halve HBM/VMEM again,
    # gated on the accuracy budget (bf16 already only passes f32 check at rtol=1e-1).
    m_op = m.astype(jnp.bfloat16)               # halve HBM/VMEM bytes; native MXU path
    y0 = jnp.zeros((n_pad, d_pad), jnp.float32).at[:n, :d].set(x.astype(jnp.float32))
    return m_op, y0


def hard_att_odeblock_forward(x, edge_index, att, opt, num_nodes, training=True):
    """Glue (attention sampling / renormalisation / dense assembly) + Pallas RK4 kernel."""
    m_op, y0 = _assemble_diffusion_operator(x, edge_index, att, opt, num_nodes, training)
    z = rk4_attention_step(m_op, y0)
    return z[:num_nodes, : x.shape[1]]


def _rk4_reference(m, y0, cast_bf16):
    """Pure-JAX reference for one 3/8-rule RK4 step of dy/dt = M @ y, h = 1."""

    def f(y):
        if cast_bf16:
            return jnp.dot(m, y.astype(jnp.bfloat16), preferred_element_type=jnp.float32)
        return jnp.dot(m, y, preferred_element_type=jnp.float32)

    third = 1.0 / 3.0
    k1 = f(y0)
    k2 = f(y0 + k1 * third)
    k3 = f(y0 + (k2 - k1 * third))
    k4 = f(y0 + (k1 - k2 + k3))
    return y0 + (k1 + 3.0 * (k2 + k3) + k4) * 0.125


if __name__ == "__main__":
    N = 64                                   # data.num_nodes
    D = 32                                   # opt['hidden_dim']
    opt = {"hidden_dim": D, "att_samp_pct": 0.5, "attention_norm_idx": 0}

    # data.edge_index is None branch: fully connected graph minus self loops
    ii, jj = np.meshgrid(np.arange(N), np.arange(N), indexing="ij")
    sel = ii != jj
    edge_index = jnp.asarray(np.stack([ii[sel], jj[sel]]), dtype=jnp.int32)  # (2, E)
    E = edge_index.shape[1]

    key = jax.random.PRNGKey(0)
    kx, ka = jax.random.split(key)
    x = jax.random.normal(kx, (N, D), dtype=jnp.float32)
    # SpGraphTransAttentionLayer stub: att = torch.rand(E, 1)
    att = jax.random.uniform(ka, (E, 1), dtype=jnp.float32)

    z = hard_att_odeblock_forward(x, edge_index, att, opt, N, training=True)
    z = jax.block_until_ready(z)

    # Apples-to-apples reference: same padded bf16 operator, XLA MXU dots.
    m_op, y0 = _assemble_diffusion_operator(x, edge_index, att, opt, N, training=True)
    z_bf = _rk4_reference(m_op, y0, cast_bf16=True)[:N, :D]
    np.testing.assert_allclose(np.asarray(z), np.asarray(z_bf), rtol=1e-3, atol=1e-3)

    # End-to-end f32 sanity check (tolerance covers bf16 operand quantisation).
    mean_att = att.mean(axis=1)
    thr = jnp.quantile(mean_att, 1.0 - opt["att_samp_pct"])
    kept = jnp.where(mean_att > thr, mean_att, 0.0)
    nidx = edge_index[opt["attention_norm_idx"]]
    sums = jnp.zeros((N,), jnp.float32).at[nidx].add(kept)
    attn = kept / (sums[nidx] + 1e-16)
    a_f32 = jnp.zeros((N, N), jnp.float32).at[edge_index[0], edge_index[1]].add(attn)
    m_f32 = a_f32 - jnp.eye(N, dtype=jnp.float32)
    z_f32 = _rk4_reference(m_f32, x, cast_bf16=False)
    np.testing.assert_allclose(np.asarray(z), np.asarray(z_f32), rtol=1e-1, atol=1e-1)

    print("KERNEL_OK")
</pallas_src>

<mosaic_0001>
module attributes {stable_mosaic.version = 11 : i64} {
  func.func @kernel(%arg0: i32, %arg1: memref<128x128xbf16, #tpu.memory_space<any>>, %arg2: memref<128x128xf32, #tpu.memory_space<vmem>>, %arg3: memref<128x128xf32, #tpu.memory_space<vmem>>, %arg4: memref<1x128x128xbf16, #tpu.memory_space<vmem>>, %arg5: memref<128x128xf32, #tpu.memory_space<vmem>>, %arg6: memref<128x128xbf16, #tpu.memory_space<vmem>>, %arg7: memref<128x128xbf16, #tpu.memory_space<vmem>>, %arg8: memref<2x!tpu.dma_semaphore, #tpu.memory_space<semaphore_mem>>) attributes {dimension_semantics = [#tpu.dimension_semantics<arbitrary>], iteration_bounds = array<i64: 1>, scalar_prefetch = 0 : i64, scratch_operands = 5 : i64, tpu.core_type = #tpu.core_type<tc>, window_params = [{}, {pipeline_mode = #tpu.pipeline_mode<synchronous>, transform_indices = @transform_1, window_bounds = array<i64: 128, 128>}, {pipeline_mode = #tpu.pipeline_mode<synchronous>, transform_indices = @transform_2, window_bounds = array<i64: 128, 128>}]} {
    %c0_i32 = arith.constant 0 : i32
    %0 = arith.cmpi eq, %arg0, %c0_i32 : i32
    %1 = arith.extui %0 : i1 to i32
    %c0_i32_0 = arith.constant 0 : i32
    %2 = arith.cmpi ne, %1, %c0_i32_0 : i32
    scf.if %2 {
      %c0_22 = arith.constant 0 : index
      %c0_23 = arith.constant 0 : index
      %43 = vector.load %arg2[%c0_22, %c0_23] : memref<128x128xf32, #tpu.memory_space<vmem>>, vector<128x128xf32>
      %44 = arith.truncf %43 : vector<128x128xf32> to vector<128x128xbf16>
      %c0_24 = arith.constant 0 : index
      %c0_25 = arith.constant 0 : index
      %45 = vector.load %arg6[%c0_24, %c0_25] : memref<128x128xbf16, #tpu.memory_space<vmem>>, vector<128x128xbf16>
      tpu.vector_store %arg6[%c0_24, %c0_25], %44 {strides = array<i32>} : memref<128x128xbf16, #tpu.memory_space<vmem>>, vector<128x128xbf16>,
      %c0_i32_26 = arith.constant 0 : i32
      %c0_i32_27 = arith.constant 0 : i32
      %c0_i32_28 = arith.constant 0 : i32
      %c0_i32_29 = arith.constant 0 : i32
      %46 = tpu.memref_slice %arg1[%c0_i32_28, %c0_i32_29] : memref<128x128xbf16, #tpu.memory_space<any>> -> memref<128x128xbf16, #tpu.memory_space<any>>
      %c0_i32_30 = arith.constant 0 : i32
      %c0_i32_31 = arith.constant 0 : i32
      %47 = tpu.memref_slice %arg4[%c0_i32_26, %c0_i32_30, %c0_i32_31] : memref<1x128x128xbf16, #tpu.memory_space<vmem>> -> memref<1x128x128xbf16, #tpu.memory_space<vmem>>
      %48 = tpu.memref_squeeze %47 : memref<1x128x128xbf16, #tpu.memory_space<vmem>> -> memref<128x128xbf16, #tpu.memory_space<vmem>>
      %49 = tpu.memref_slice %arg8[%c0_i32_27] : memref<2x!tpu.dma_semaphore, #tpu.memory_space<semaphore_mem>> -> memref<1x!tpu.dma_semaphore, #tpu.memory_space<semaphore_mem>>
      %50 = tpu.memref_squeeze %49 : memref<1x!tpu.dma_semaphore, #tpu.memory_space<semaphore_mem>> -> memref<!tpu.dma_semaphore, #tpu.memory_space<semaphore_mem>>
      tpu.enqueue_dma source(%46 : memref<128x128xbf16, #tpu.memory_space<any>>) target(%48 : memref<128x128xbf16, #tpu.memory_space<vmem>>) target_semaphore(%50 : memref<!tpu.dma_semaphore, #tpu.memory_space<semaphore_mem>>)
    } else {
    }
    %c1_i32 = arith.constant 1 : i32
    %3 = arith.addi %arg0, %c1_i32 : i32
    %c1_i32_1 = arith.constant 1 : i32
    %4 = arith.cmpi slt, %3, %c1_i32_1 : i32
    %5 = arith.extui %4 : i1 to i32
    %c0_i32_2 = arith.constant 0 : i32
    %6 = arith.cmpi ne, %5, %c0_i32_2 : i32
    scf.if %6 {
      %c1_i32_22 = arith.constant 1 : i32
      %43 = arith.addi %arg0, %c1_i32_22 : i32
      %c1_i32_23 = arith.constant 1 : i32
      %44 = arith.addi %arg0, %c1_i32_23 : i32
      %c2_i32_24 = arith.constant 2 : i32
      %c0_i32_25 = arith.constant 0 : i32
      %45 = arith.cmpi eq, %c2_i32_24, %c0_i32_25 : i32
      %c1_i32_26 = arith.constant 1 : i32
      %46 = arith.select %45, %c1_i32_26, %c2_i32_24 : i32
      %47 = arith.remsi %44, %46 : i32
      %c0_i32_27 = arith.constant 0 : i32
      %48 = arith.cmpi ne, %47, %c0_i32_27 : i32
      %c0_i32_28 = arith.constant 0 : i32
      %49 = arith.cmpi slt, %47, %c0_i32_28 : i32
      %c0_i32_29 = arith.constant 0 : i32
      %50 = arith.cmpi slt, %46, %c0_i32_29 : i32
      %51 = arith.xori %49, %50 : i1
      %52 = arith.andi %51, %48 : i1
      %53 = arith.addi %47, %46 : i32
      %54 = arith.select %52, %53, %47 : i32
      %c128_i32_30 = arith.constant 128 : i32
      %55 = arith.muli %43, %c128_i32_30 : i32
      %c0_i32_31 = arith.constant 0 : i32
      %56 = tpu.memref_slice %arg1[%55, %c0_i32_31] : memref<128x128xbf16, #tpu.memory_space<any>> -> memref<128x128xbf16, #tpu.memory_space<any>>
      %c0_i32_32 = arith.constant 0 : i32
      %c0_i32_33 = arith.constant 0 : i32
      %57 = tpu.memref_slice %arg4[%43, %c0_i32_32, %c0_i32_33] : memref<1x128x128xbf16, #tpu.memory_space<vmem>> -> memref<1x128x128xbf16, #tpu.memory_space<vmem>>
      %58 = tpu.memref_squeeze %57 : memref<1x128x128xbf16, #tpu.memory_space<vmem>> -> memref<128x128xbf16, #tpu.memory_space<vmem>>
      %59 = tpu.memref_slice %arg8[%54] : memref<2x!tpu.dma_semaphore, #tpu.memory_space<semaphore_mem>> -> memref<1x!tpu.dma_semaphore, #tpu.memory_space<semaphore_mem>>
      %60 = tpu.memref_squeeze %59 : memref<1x!tpu.dma_semaphore, #tpu.memory_space<semaphore_mem>> -> memref<!tpu.dma_semaphore, #tpu.memory_space<semaphore_mem>>
      tpu.enqueue_dma source(%56 : memref<128x128xbf16, #tpu.memory_space<any>>) target(%58 : memref<128x128xbf16, #tpu.memory_space<vmem>>) target_semaphore(%60 : memref<!tpu.dma_semaphore, #tpu.memory_space<semaphore_mem>>)
    } else {
    }
    %c2_i32 = arith.constant 2 : i32
    %c0_i32_3 = arith.constant 0 : i32
    %7 = arith.cmpi eq, %c2_i32, %c0_i32_3 : i32
    %c1_i32_4 = arith.constant 1 : i32
    %8 = arith.select %7, %c1_i32_4, %c2_i32 : i32
    %9 = arith.remsi %arg0, %8 : i32
    %c0_i32_5 = arith.constant 0 : i32
    %10 = arith.cmpi ne, %9, %c0_i32_5 : i32
    %c0_i32_6 = arith.constant 0 : i32
    %11 = arith.cmpi slt, %9, %c0_i32_6 : i32
    %c0_i32_7 = arith.constant 0 : i32
    %12 = arith.cmpi slt, %8, %c0_i32_7 : i32
    %13 = arith.xori %11, %12 : i1
    %14 = arith.andi %13, %10 : i1
    %15 = arith.addi %9, %8 : i32
    %16 = arith.select %14, %15, %9 : i32
    %c128_i32 = arith.constant 128 : i32
    %17 = arith.muli %arg0, %c128_i32 : i32
    %c0_i32_8 = arith.constant 0 : i32
    %18 = tpu.memref_slice %arg1[%17, %c0_i32_8] : memref<128x128xbf16, #tpu.memory_space<any>> -> memref<128x128xbf16, #tpu.memory_space<any>>
    %c0_i32_9 = arith.constant 0 : i32
    %c0_i32_10 = arith.constant 0 : i32
    %19 = tpu.memref_slice %arg4[%arg0, %c0_i32_9, %c0_i32_10] : memref<1x128x128xbf16, #tpu.memory_space<vmem>> -> memref<1x128x128xbf16, #tpu.memory_space<vmem>>
    %20 = tpu.memref_squeeze %19 : memref<1x128x128xbf16, #tpu.memory_space<vmem>> -> memref<128x128xbf16, #tpu.memory_space<vmem>>
    %21 = tpu.memref_slice %arg8[%16] : memref<2x!tpu.dma_semaphore, #tpu.memory_space<semaphore_mem>> -> memref<1x!tpu.dma_semaphore, #tpu.memory_space<semaphore_mem>>
    %22 = tpu.memref_squeeze %21 : memref<1x!tpu.dma_semaphore, #tpu.memory_space<semaphore_mem>> -> memref<!tpu.dma_semaphore, #tpu.memory_space<semaphore_mem>>
    tpu.wait_dma2 semaphore(%22 : memref<!tpu.dma_semaphore, #tpu.memory_space<semaphore_mem>>) src(%18 : memref<128x128xbf16, #tpu.memory_space<any>>) dst(%20 : memref<128x128xbf16, #tpu.memory_space<vmem>>)
    %c128_i32_11 = arith.constant 128 : i32
    %23 = arith.muli %arg0, %c128_i32_11 : i32
    %24 = tpu.assume_multiple %23, 128 : i32
    %25 = arith.index_cast %arg0 : i32 to index
    %c0 = arith.constant 0 : index
    %c0_12 = arith.constant 0 : index
    %26 = vector.load %arg4[%25, %c0, %c0_12] : memref<1x128x128xbf16, #tpu.memory_space<vmem>>, vector<1x128x128xbf16>
    %27 = vector.shape_cast %26 : vector<1x128x128xbf16> to vector<128x128xbf16>
    %c0_13 = arith.constant 0 : index
    %c0_14 = arith.constant 0 : index
    %28 = vector.load %arg6[%c0_13, %c0_14] : memref<128x128xbf16, #tpu.memory_space<vmem>>, vector<128x128xbf16>
    %cst = arith.constant dense<0.000000e+00> : vector<128x128xf32>
    %29 = tpu.matmul %27, %28, %cst {dimension_numbers = #tpu.dot_dimension_numbers<[1], [0], [0], [1], [0, 0, 1, 1], [], []>} : vector<128x128xbf16>, vector<128x128xbf16>, vector<128x128xf32> -> vector<128x128xf32>
    %30 = arith.index_cast %24 : i32 to index
    %c0_15 = arith.constant 0 : index
    %31 = vector.load %arg5[%30, %c0_15] : memref<128x128xf32, #tpu.memory_space<vmem>>, vector<128x128xf32>
    tpu.vector_store %arg5[%30, %c0_15], %29 {strides = array<i32>} : memref<128x128xf32, #tpu.memory_space<vmem>>, vector<128x128xf32>,
    %32 = arith.index_cast %24 : i32 to index
    %c0_16 = arith.constant 0 : index
    %33 = vector.load %arg2[%32, %c0_16] : memref<128x128xf32, #tpu.memory_space<vmem>>, vector<128x128xf32>
    %cst_17 = arith.constant 0.333333343 : f32
    %34 = vector.broadcast %cst_17 : f32 to vector<128x128xf32>
    %35 = arith.mulf %29, %34 : vector<128x128xf32>
    %36 = arith.addf %33, %35 : vector<128x128xf32>
    %37 = arith.truncf %36 : vector<128x128xf32> to vector<128x128xbf16>
    %38 = arith.index_cast %24 : i32 to index
    %c0_18 = arith.constant 0 : index
    %39 = vector.load %arg7[%38, %c0_18] : memref<128x128xbf16, #tpu.memory_space<vmem>>, vector<128x128xbf16>
    tpu.vector_store %arg7[%38, %c0_18], %37 {strides = array<i32>} : memref<128x128xbf16, #tpu.memory_space<vmem>>, vector<128x128xbf16>,
    %c0_i32_19 = arith.constant 0 : i32
    %40 = arith.cmpi eq, %arg0, %c0_i32_19 : i32
    %41 = arith.extui %40 : i1 to i32
    %cst_20 = arith.constant 0.333333343 : f32
    %c0_i32_21 = arith.constant 0 : i32
    %42 = arith.cmpi ne, %41, %c0_i32_21 : i32
    scf.if %42 {
      %c0_i32_22 = arith.constant 0 : i32
      %c128_i32_23 = arith.constant 128 : i32
      %43 = arith.muli %c0_i32_22, %c128_i32_23 : i32
      %44 = tpu.assume_multiple %43, 128 : i32
      %45 = arith.index_cast %c0_i32_22 : i32 to index
      %c0_24 = arith.constant 0 : index
      %c0_25 = arith.constant 0 : index
      %46 = vector.load %arg4[%45, %c0_24, %c0_25] : memref<1x128x128xbf16, #tpu.memory_space<vmem>>, vector<1x128x128xbf16>
      %47 = vector.shape_cast %46 : vector<1x128x128xbf16> to vector<128x128xbf16>
      %c0_26 = arith.constant 0 : index
      %c0_27 = arith.constant 0 : index
      %48 = vector.load %arg7[%c0_26, %c0_27] : memref<128x128xbf16, #tpu.memory_space<vmem>>, vector<128x128xbf16>
      %cst_28 = arith.constant dense<0.000000e+00> : vector<128x128xf32>
      %49 = tpu.matmul %47, %48, %cst_28 {dimension_numbers = #tpu.dot_dimension_numbers<[1], [0], [0], [1], [0, 0, 1, 1], [], []>} : vector<128x128xbf16>, vector<128x128xbf16>, vector<128x128xf32> -> vector<128x128xf32>
      %50 = arith.index_cast %44 : i32 to index
      %c0_29 = arith.constant 0 : index
      %51 = vector.load %arg5[%50, %c0_29] : memref<128x128xf32, #tpu.memory_space<vmem>>, vector<128x128xf32>
      %52 = arith.index_cast %44 : i32 to index
      %c0_30 = arith.constant 0 : index
      %53 = vector.load %arg2[%52, %c0_30] : memref<128x128xf32, #tpu.memory_space<vmem>>, vector<128x128xf32>
      %cst_31 = arith.constant 3.000000e+00 : f32
      %54 = vector.broadcast %cst_31 : f32 to vector<128x128xf32>
      %55 = arith.mulf %54, %49 : vector<128x128xf32>
      %56 = arith.addf %51, %55 : vector<128x128xf32>
      %57 = arith.index_cast %44 : i32 to index
      %c0_32 = arith.constant 0 : index
      %58 = vector.load %arg3[%57, %c0_32] : memref<128x128xf32, #tpu.memory_space<vmem>>, vector<128x128xf32>
      tpu.vector_store %arg3[%57, %c0_32], %56 {strides = array<i32>} : memref<128x128xf32, #tpu.memory_space<vmem>>, vector<128x128xf32>,
      %59 = arith.subf %51, %49 : vector<128x128xf32>
      %60 = arith.index_cast %44 : i32 to index
      %c0_33 = arith.constant 0 : index
      %61 = vector.load %arg5[%60, %c0_33] : memref<128x128xf32, #tpu.memory_space<vmem>>, vector<128x128xf32>
      tpu.vector_store %arg5[%60, %c0_33], %59 {strides = array<i32>} : memref<128x128xf32, #tpu.memory_space<vmem>>, vector<128x128xf32>,
      %62 = vector.broadcast %cst_20 : f32 to vector<128x128xf32>
      %63 = arith.mulf %51, %62 : vector<128x128xf32>
      %64 = arith.subf %49, %63 : vector<128x128xf32>
      %65 = arith.addf %53, %64 : vector<128x128xf32>
      %66 = arith.truncf %65 : vector<128x128xf32> to vector<128x128xbf16>
      %67 = arith.index_cast %44 : i32 to index
      %c0_34 = arith.constant 0 : index
      %68 = vector.load %arg6[%67, %c0_34] : memref<128x128xbf16, #tpu.memory_space<vmem>>, vector<128x128xbf16>
      tpu.vector_store %arg6[%67, %c0_34], %66 {strides = array<i32>} : memref<128x128xbf16, #tpu.memory_space<vmem>>, vector<128x128xbf16>,
      %c1_i32_35 = arith.constant 1 : i32
      %c0_i32_36 = arith.constant 0 : i32
      %c128_i32_37 = arith.constant 128 : i32
      %69 = arith.muli %c0_i32_36, %c128_i32_37 : i32
      %70 = tpu.assume_multiple %69, 128 : i32
      %71 = arith.index_cast %c0_i32_36 : i32 to index
      %c0_38 = arith.constant 0 : index
      %c0_39 = arith.constant 0 : index
      %72 = vector.load %arg4[%71, %c0_38, %c0_39] : memref<1x128x128xbf16, #tpu.memory_space<vmem>>, vector<1x128x128xbf16>
      %73 = vector.shape_cast %72 : vector<1x128x128xbf16> to vector<128x128xbf16>
      %c0_40 = arith.constant 0 : index
      %c0_41 = arith.constant 0 : index
      %74 = vector.load %arg6[%c0_40, %c0_41] : memref<128x128xbf16, #tpu.memory_space<vmem>>, vector<128x128xbf16>
      %cst_42 = arith.constant dense<0.000000e+00> : vector<128x128xf32>
      %75 = tpu.matmul %73, %74, %cst_42 {dimension_numbers = #tpu.dot_dimension_numbers<[1], [0], [0], [1], [0, 0, 1, 1], [], []>} : vector<128x128xbf16>, vector<128x128xbf16>, vector<128x128xf32> -> vector<128x128xf32>
      %76 = arith.index_cast %70 : i32 to index
      %c0_43 = arith.constant 0 : index
      %77 = vector.load %arg2[%76, %c0_43] : memref<128x128xf32, #tpu.memory_space<vmem>>, vector<128x128xf32>
      %78 = arith.index_cast %70 : i32 to index
      %c0_44 = arith.constant 0 : index
      %79 = vector.load %arg3[%78, %c0_44] : memref<128x128xf32, #tpu.memory_space<vmem>>, vector<128x128xf32>
      %cst_45 = arith.constant 3.000000e+00 : f32
      %80 = vector.broadcast %cst_45 : f32 to vector<128x128xf32>
      %81 = arith.mulf %80, %75 : vector<128x128xf32>
      %82 = arith.addf %79, %81 : vector<128x128xf32>
      %83 = arith.index_cast %70 : i32 to index
      %c0_46 = arith.constant 0 : index
      %84 = vector.load %arg3[%83, %c0_46] : memref<128x128xf32, #tpu.memory_space<vmem>>, vector<128x128xf32>
      tpu.vector_store %arg3[%83, %c0_46], %82 {strides = array<i32>} : memref<128x128xf32, #tpu.memory_space<vmem>>, vector<128x128xf32>,
      %85 = arith.index_cast %70 : i32 to index
      %c0_47 = arith.constant 0 : index
      %86 = vector.load %arg5[%85, %c0_47] : memref<128x128xf32, #tpu.memory_space<vmem>>, vector<128x128xf32>
      %87 = arith.addf %86, %75 : vector<128x128xf32>
      %88 = arith.addf %77, %87 : vector<128x128xf32>
      %89 = arith.truncf %88 : vector<128x128xf32> to vector<128x128xbf16>
      %90 = arith.index_cast %70 : i32 to index
      %c0_48 = arith.constant 0 : index
      %91 = vector.load %arg7[%90, %c0_48] : memref<128x128xbf16, #tpu.memory_space<vmem>>, vector<128x128xbf16>
      tpu.vector_store %arg7[%90, %c0_48], %89 {strides = array<i32>} : memref<128x128xbf16, #tpu.memory_space<vmem>>, vector<128x128xbf16>,
      %c1_i32_49 = arith.constant 1 : i32
      %c0_i32_50 = arith.constant 0 : i32
      %c128_i32_51 = arith.constant 128 : i32
      %92 = arith.muli %c0_i32_50, %c128_i32_51 : i32
      %93 = tpu.assume_multiple %92, 128 : i32
      %94 = arith.index_cast %c0_i32_50 : i32 to index
      %c0_52 = arith.constant 0 : index
      %c0_53 = arith.constant 0 : index
      %95 = vector.load %arg4[%94, %c0_52, %c0_53] : memref<1x128x128xbf16, #tpu.memory_space<vmem>>, vector<1x128x128xbf16>
      %96 = vector.shape_cast %95 : vector<1x128x128xbf16> to vector<128x128xbf16>
      %c0_54 = arith.constant 0 : index
      %c0_55 = arith.constant 0 : index
      %97 = vector.load %arg7[%c0_54, %c0_55] : memref<128x128xbf16, #tpu.memory_space<vmem>>, vector<128x128xbf16>
      %cst_56 = arith.constant dense<0.000000e+00> : vector<128x128xf32>
      %98 = tpu.matmul %96, %97, %cst_56 {dimension_numbers = #tpu.dot_dimension_numbers<[1], [0], [0], [1], [0, 0, 1, 1], [], []>} : vector<128x128xbf16>, vector<128x128xbf16>, vector<128x128xf32> -> vector<128x128xf32>
      %99 = arith.index_cast %93 : i32 to index
      %c0_57 = arith.constant 0 : index
      %100 = vector.load %arg2[%99, %c0_57] : memref<128x128xf32, #tpu.memory_space<vmem>>, vector<128x128xf32>
      %101 = arith.index_cast %93 : i32 to index
      %c0_58 = arith.constant 0 : index
      %102 = vector.load %arg3[%101, %c0_58] : memref<128x128xf32, #tpu.memory_space<vmem>>, vector<128x128xf32>
      %103 = arith.addf %102, %98 : vector<128x128xf32>
      %cst_59 = arith.constant 1.250000e-01 : f32
      %104 = vector.broadcast %cst_59 : f32 to vector<128x128xf32>
      %105 = arith.mulf %103, %104 : vector<128x128xf32>
      %106 = arith.addf %100, %105 : vector<128x128xf32>
      %107 = arith.index_cast %93 : i32 to index
      %c0_60 = arith.constant 0 : index
      %108 = vector.load %arg3[%107, %c0_60] : memref<128x128xf32, #tpu.memory_space<vmem>>, vector<128x128xf32>
      tpu.vector_store %arg3[%107, %c0_60], %106 {strides = array<i32>} : memref<128x128xf32, #tpu.memory_space<vmem>>, vector<128x128xf32>,
      %c1_i32_61 = arith.constant 1 : i32
    } else {
    }
    return
  }
  func.func @transform_1(%arg0: i32) -> (i32, i32) {
    %c0_i32 = arith.constant 0 : i32
    %c0_i32_0 = arith.constant 0 : i32
    %c0_i32_1 = arith.constant 0 : i32
    return %c0_i32, %c0_i32_0 : i32, i32
  }
  func.func @transform_2(%arg0: i32) -> (i32, i32) {
    %c0_i32 = arith.constant 0 : i32
    %c0_i32_0 = arith.constant 0 : i32
    %c0_i32_1 = arith.constant 0 : i32
    return %c0_i32, %c0_i32_0 : i32, i32
  }
}

</mosaic_0001>

<llo_original>
// kernel: tpu_custom_call.1
$region0: #{tpu_custom_call.1}
  #allocation0 [shape = 'u32[]', space=smem, size = 0x4, offset = 0x4, fixed_abs, tag = 'smem constant byte address 0x4 - core index']
  #allocation1 [shape = 'u32[144,128]{1,0:T(1,128)}', space=vmem, size = 0x12000, scoped, tag = 'internal scratch']
  #allocation2 [shape = 'bf16[1,128,128]{2,1,0:T(16,128)(2,1)}', space=vmem, size = 0x8000, scoped, tag = 'scratch operand']
  #allocation3 [shape = 'f32[128,128]{1,0:T(8,128)}', space=vmem, size = 0x10000, scoped, tag = 'scratch operand']
  #allocation4 [shape = 'bf16[128,128]{1,0:T(16,128)(2,1)}', space=vmem, size = 0x8000, scoped, tag = 'scratch operand']
  #allocation5 [shape = 'bf16[128,128]{1,0:T(16,128)(2,1)}', space=vmem, size = 0x8000, scoped, tag = 'scratch operand']
  #allocation6 [shape = 's32[2]{0}', space=sflag, size = 0x8, scoped, tag = 'scratch operand']
  #allocation11 [shape = 's32[]', space=sflag, size = 0x4, offset = 0, fixed_abs, tag = 'sflag constant byte address 0x0 - dummy sync flag']
  #allocation12 [shape = 's32[]', space=sflag, size = 0x4, offset = 0, fixed_abs, tag = 'sflag constant byte address 0x0 - dummy sync flag']
  #allocation13 [shape = 'u32[]', space=smem, size = 0x4, offset = 0x44, fixed_abs, tag = 'smem constant byte address 0x44 - assertion arg 0']
  #allocation14 [shape = 'u32[]', space=smem, size = 0x4, offset = 0x48, fixed_abs, tag = 'smem constant byte address 0x48 - assertion arg 1']
  #allocation15 [shape = 's32[]', space=sflag, size = 0x4, offset = 0, fixed_abs, tag = 'sflag constant byte address 0x0 - dummy sync flag']
  #allocation16 [shape = 's32[]', space=sflag, size = 0x4, offset = 0, fixed_abs, tag = 'sflag constant byte address 0x0 - dummy sync flag']
  %s0 = inlined_call_operand.hbm [shape: bf16[128,128], index: 0, kind: input, shape index: {}]
  %s1 = inlined_call_operand.hbm [shape: f32[128,128], index: 1, kind: input, shape index: {}]
  %s2 = inlined_call_operand.hbm [shape: f32[128,128], index: 2, kind: output, shape index: {}]
  %s3 = sld [smem:[#allocation0]]
  $region38: #{tpu_custom_call.1} parent=0
    _
  %s5 = ssub.s32 1, %s3
  %s6 = scalar_select 0, %s5, %s3
  $region1: #{tpu_custom_call.1} parent=0
    #allocation7 [shape = 'u8[65536]{0}', space=vmem, size = 0x10000, scoped, tag = 'input window, operand 1, single buffered']
    #allocation8 [shape = 's32[1]{0}', space=sflag, size = 0x4, scoped, tag = 'scoped memory for tpu_custom_call.1']
    #allocation9 [shape = 's32[1]{0}', space=sflag, size = 0x4, scoped, tag = 'scoped memory for tpu_custom_call.1']
    #allocation10 [shape = 'u8[65536]{0}', space=vmem, size = 0x10000, scoped, tag = 'output window, operand 0, single buffered']
    %7 = vsyncpa [#allocation8], 0
    %8 = vsyncpa [#allocation9], 0
    // Predicated region
    $region2: #{tpu_custom_call.1} parent=1 // pred_check
      _
    $region3: #{tpu_custom_call.1} parent=1 // pred_check_branch
      %10 = sbr.rel (0) target = $region5
    $region4: #{tpu_custom_call.1} parent=1 // pred_region
      %s12 = ssub.s32 2048, 2048
      %13 = vsyncadd [#allocation8], %s12
      %s14 = sshll.u32 [#allocation7], 4
      %s15 = int_to_ptr.vmem [resolvable:$true] %s14
      %20 = dma.hbm_to_vmem [thread:$0]  %s1, 2048, %s15, [#allocation8], 128, 128, 8
    $region5: #{tpu_custom_call.1} parent=1 // pred_fallthru
      _
    // Predicated region
    $region6: #{tpu_custom_call.1} parent=1 // pred_check
      _
    $region7: #{tpu_custom_call.1} parent=1 // pred_check_branch
      %22 = sbr.rel (0) target = $region9
    $region8: #{tpu_custom_call.1} parent=1 // pred_region
      %23 = dma.done [#allocation8], 2048
    $region9: #{tpu_custom_call.1} parent=1 // pred_fallthru
      _
    %p25 = scmp.eq.s32.totalorder 0, 0
    // Predicated region
    $region10: #{tpu_custom_call.1} parent=1 // pred_check
      %p26 = pneg %p25
    $region11: #{tpu_custom_call.1} parent=1 // pred_check_branch
      %28 = sbr.rel (%p26) target = $region13
    $region12: #{tpu_custom_call.1} parent=1 // pred_region
      %v29 = vld [vmem:[#allocation7] sm:$0xff]
      %v30 = vld [vmem:[#allocation7 + $0x8] sm:$0xff]
      %v31 = vld [vmem:[#allocation7 + $0x10] sm:$0xff]
      %v32 = vld [vmem:[#allocation7 + $0x18] sm:$0xff]
      %v33 = vld [vmem:[#allocation7 + $0x20] sm:$0xff]
      %v34 = vld [vmem:[#allocation7 + $0x28] sm:$0xff]
      %v35 = vld [vmem:[#allocation7 + $0x30] sm:$0xff]
      %v36 = vld [vmem:[#allocation7 + $0x38] sm:$0xff]
      %v37 = vld [vmem:[#allocation7 + $0x40] sm:$0xff]
      %v38 = vld [vmem:[#allocation7 + $0x48] sm:$0xff]
      %v39 = vld [vmem:[#allocation7 + $0x50] sm:$0xff]
      %v40 = vld [vmem:[#allocation7 + $0x58] sm:$0xff]
      %v41 = vld [vmem:[#allocation7 + $0x60] sm:$0xff]
      %v42 = vld [vmem:[#allocation7 + $0x68] sm:$0xff]
      %v43 = vld [vmem:[#allocation7 + $0x70] sm:$0xff]
      %v44 = vld [vmem:[#allocation7 + $0x78] sm:$0xff]
      %v45 = vpack.c.bf16 %v30, %v29
      %v46 = vpack.c.bf16 %v32, %v31
      %v47 = vpack.c.bf16 %v34, %v33
      %v48 = vpack.c.bf16 %v36, %v35
      %v49 = vpack.c.bf16 %v38, %v37
      %v50 = vpack.c.bf16 %v40, %v39
      %v51 = vpack.c.bf16 %v42, %v41
      %v52 = vpack.c.bf16 %v44, %v43
      %53 = vst [vmem:[#allocation4] sm:$0xff] %v45
      %54 = vst [vmem:[#allocation4 + $0x8] sm:$0xff] %v46
      %55 = vst [vmem:[#allocation4 + $0x10] sm:$0xff] %v47
      %56 = vst [vmem:[#allocation4 + $0x18] sm:$0xff] %v48
      %57 = vst [vmem:[#allocation4 + $0x20] sm:$0xff] %v49
      %58 = vst [vmem:[#allocation4 + $0x28] sm:$0xff] %v50
      %59 = vst [vmem:[#allocation4 + $0x30] sm:$0xff] %v51
      %60 = vst [vmem:[#allocation4 + $0x38] sm:$0xff] %v52
      // Predicated region
      $region14: #{tpu_custom_call.1} parent=12 // pred_check
        _
      $region15: #{tpu_custom_call.1} parent=12 // pred_check_branch
        %62 = sbr.rel target = $region17
      $region16: #{tpu_custom_call.1} parent=12 // pred_region
        %63 = sst [smem:[#allocation13]] [#allocation12]
        %64 = sst [smem:[#allocation14]] [#allocation11]
      $region17: #{tpu_custom_call.1} parent=12 // pred_fallthru
        _
      %66 = shalt.err (0)
      %s68 = sshll.u32 [#allocation2], 4
      %s69 = int_to_ptr.vmem [resolvable:$true] %s68
      %71 = dma.hbm_to_vmem [thread:$0]  %s0, 1024, %s69, [#allocation6]
    $region13: #{tpu_custom_call.1} parent=1 // pred_fallthru
      _
    %s72 = sadd.s32 0, 1
    %p73 = scmp.lt.s32.totalorder %s72, 1
    // Predicated region
    $region18: #{tpu_custom_call.1} parent=1 // pred_check
      %p74 = pneg %p73
    $region19: #{tpu_custom_call.1} parent=1 // pred_check_branch
      %76 = sbr.rel (%p74) target = $region21
    $region20: #{tpu_custom_call.1} parent=1 // pred_region
      %p77 = scmp.lt.s32.totalorder %s72, 0
      %s78 = ssub.s32 0, %s72
      %s79 = scalar_select %p77, %s78, %s72
      %s80 = sand.u32 %s79, 1
      %s81 = ssub.s32 0, %s80
      %s82 = scalar_select %p77, %s81, %s80
      %p83 = scmp.ne.s32.totalorder %s82, 0
      %p84 = scmp.lt.s32.totalorder %s82, 0
      %p85 = pnand %p84, %p83
      %p86 = pneg %p85
      %s87 = sadd.s32 %s82, 2
      %s88 = scalar_select %p86, %s87, %s82
      %s89 = smul.u32 %s72, 128
      %s90 = sshra.s32 %s89, 3
      %s91 = sand.u32 %s89, 7
      %s92 = smul.addr %s90, 64
      %s93 = scalar_lea.hbm %s0, %s92
      %s94 = smul.u32 %s72, 8
      %s95 = smul.addr %s94, 8
      %s96 = scalar_lea.vmem [#allocation2], %s95
      %s97 = scalar_lea.sflag [#allocation6], %s88
      // Predicated region
      $region22: #{tpu_custom_call.1} parent=20 // pred_check
        _
      $region23: #{tpu_custom_call.1} parent=20 // pred_check_branch
        %99 = sbr.rel target = $region25
      $region24: #{tpu_custom_call.1} parent=20 // pred_region
        %100 = sst [smem:[#allocation13]] [#allocation16]
        %101 = sst [smem:[#allocation14]] [#allocation15]
      $region25: #{tpu_custom_call.1} parent=20 // pred_fallthru
        _
      %103 = shalt.err (0)
      %s105 = sshll.u32 %s96, 4
      %s106 = int_to_ptr.vmem [resolvable:$true] %s105
      %108 = dma.hbm_to_vmem [thread:$0]  %s93, 1024, %s106, %s97
    $region21: #{tpu_custom_call.1} parent=1 // pred_fallthru
      _
    %s109 = ssub.s32 0, 0
    %s110 = ssub.s32 0, 0
    %p111 = scmp.ne.s32.totalorder 0, 0
    %p112 = scmp.lt.s32.totalorder 0, 0
    %p113 = pnand %p112, %p111
    %p114 = pneg %p113
    %s115 = sadd.s32 0, 2
    %s116 = scalar_select %p114, %s115, 0
    %s117 = smul.u32 0, 128
    %s118 = smul.u32 0, 8
    %s119 = smul.addr %s118, 8
    %s120 = scalar_lea.vmem [#allocation2], %s119
    %s121 = scalar_lea.sflag [#allocation6], %s116
    %s122 = smul.u32 4, 16
    %s123 = smul.u32 %s122, 1
    %s124 = sshll.u32 %s123, 4
    %125 = dma.done %s121, %s124
    %v126 = vld [vmem:[%s120] sm:$0xff]
    %v127 = vld [vmem:[%s120 + $0x8] sm:$0xff]
    %v128 = vld [vmem:[%s120 + $0x10] sm:$0xff]
    %v129 = vld [vmem:[%s120 + $0x18] sm:$0xff]
    %v130 = vld [vmem:[%s120 + $0x20] sm:$0xff]
    %v131 = vld [vmem:[%s120 + $0x28] sm:$0xff]
    %v132 = vld [vmem:[%s120 + $0x30] sm:$0xff]
    %v133 = vld [vmem:[%s120 + $0x38] sm:$0xff]
    %v134 = vld [vmem:[#allocation4] sm:$0xff]
    %v135 = vld [vmem:[#allocation4 + $0x8] sm:$0xff]
    %v136 = vld [vmem:[#allocation4 + $0x10] sm:$0xff]
    %v137 = vld [vmem:[#allocation4 + $0x18] sm:$0xff]
    %v138 = vld [vmem:[#allocation4 + $0x20] sm:$0xff]
    %v139 = vld [vmem:[#allocation4 + $0x28] sm:$0xff]
    %v140 = vld [vmem:[#allocation4 + $0x30] sm:$0xff]
    %v141 = vld [vmem:[#allocation4 + $0x38] sm:$0xff]
    %142 = vmatprep.subr.bf16.mxu0 0
    %143 = vmatpush1.bf16.msra.mxu0 %v134
    %144 = vmatprep.subr.bf16.mxu0 0
    %145 = vmatpush1.bf16.msra.mxu0 %v135
    %146 = vmatprep.subr.bf16.mxu0 0
    %147 = vmatpush1.bf16.msra.mxu0 %v136
    %148 = vmatprep.subr.bf16.mxu0 0
    %149 = vmatpush1.bf16.msra.mxu0 %v137
    %150 = vmatprep.subr.bf16.mxu0 0
    %151 = vmatpush1.bf16.msra.mxu0 %v138
    %152 = vmatprep.subr.bf16.mxu0 0
    %153 = vmatpush1.bf16.msra.mxu0 %v139
    %154 = vmatprep.subr.bf16.mxu0 0
    %155 = vmatpush1.bf16.msra.mxu0 %v140
    %156 = vmatprep.subr.bf16.mxu0 0
    %157 = vmatpush1.bf16.msra.mxu0 %v141
    %158 = vmatprep.subr.bf16.mxu0 0
    %159 = vmatpush1.bf16.msra.mxu0 0
    %160 = vmatprep.subr.bf16.mxu0 0
    %161 = vmatpush1.bf16.msra.mxu0 0
    %162 = vmatprep.subr.bf16.mxu0 0
    %163 = vmatpush1.bf16.msra.mxu0 0
    %164 = vmatprep.subr.bf16.mxu0 0
    %165 = vmatpush1.bf16.msra.mxu0 0
    %166 = vmatprep.subr.bf16.mxu0 0
    %167 = vmatpush1.bf16.msra.mxu0 0
    %168 = vmatprep.subr.bf16.mxu0 0
    %169 = vmatpush1.bf16.msra.mxu0 0
    %170 = vmatprep.subr.bf16.mxu0 0
    %171 = vmatpush1.bf16.msra.mxu0 0
    %172 = vmatprep.subr.bf16.mxu0 0
    %173 = vmatpush1.bf16.msra.mxu0 0
    %174 = vmatprep.mubr.bf16.mxu0 0
    %175 = vmatmul.mubr.bf16.gmra.mrb[0].mxu0 %v126
    %v176 = vpop.f32.mrb[0].mxu0
    %v177 = vadd.f32 0.0, %v176
    %v178 = vpop.f32.mrb[0].mxu0
    %v179 = vpop.f32.mrb[0].mxu0
    %v180 = vadd.f32 0.0, %v179
    %v181 = vpop.f32.mrb[0].mxu0
    %182 = vmatprep.mubr.bf16.mxu0 0
    %183 = vmatmul.mubr.bf16.gmra.mrb[0].mxu0 %v127
    %v184 = vpop.f32.mrb[0].mxu0
    %v185 = vadd.f32 0.0, %v184
    %v186 = vpop.f32.mrb[0].mxu0
    %v187 = vpop.f32.mrb[0].mxu0
    %v188 = vadd.f32 0.0, %v187
    %v189 = vpop.f32.mrb[0].mxu0
    %190 = vmatprep.mubr.bf16.mxu0 0
    %191 = vmatmul.mubr.bf16.gmra.mrb[0].mxu0 %v128
    %v192 = vpop.f32.mrb[0].mxu0
    %v193 = vadd.f32 0.0, %v192
    %v194 = vpop.f32.mrb[0].mxu0
    %v195 = vpop.f32.mrb[0].mxu0
    %v196 = vadd.f32 0.0, %v195
    %v197 = vpop.f32.mrb[0].mxu0
    %198 = vmatprep.mubr.bf16.mxu0 0
    %199 = vmatmul.mubr.bf16.gmra.mrb[0].mxu0 %v129
    %v200 = vpop.f32.mrb[0].mxu0
    %v201 = vadd.f32 0.0, %v200
    %v202 = vpop.f32.mrb[0].mxu0
    %v203 = vpop.f32.mrb[0].mxu0
    %v204 = vadd.f32 0.0, %v203
    %v205 = vpop.f32.mrb[0].mxu0
    %206 = vmatprep.mubr.bf16.mxu0 0
    %207 = vmatmul.mubr.bf16.gmra.mrb[0].mxu0 %v130
    %v208 = vpop.f32.mrb[0].mxu0
    %v209 = vadd.f32 0.0, %v208
    %v210 = vpop.f32.mrb[0].mxu0
    %v211 = vpop.f32.mrb[0].mxu0
    %v212 = vadd.f32 0.0, %v211
    %v213 = vpop.f32.mrb[0].mxu0
    %214 = vmatprep.mubr.bf16.mxu0 0
    %215 = vmatmul.mubr.bf16.gmra.mrb[0].mxu0 %v131
    %v216 = vpop.f32.mrb[0].mxu0
    %v217 = vadd.f32 0.0, %v216
    %v218 = vpop.f32.mrb[0].mxu0
    %v219 = vpop.f32.mrb[0].mxu0
    %v220 = vadd.f32 0.0, %v219
    %v221 = vpop.f32.mrb[0].mxu0
    %222 = vmatprep.mubr.bf16.mxu0 0
    %223 = vmatmul.mubr.bf16.gmra.mrb[0].mxu0 %v132
    %v224 = vpop.f32.mrb[0].mxu0
    %v225 = vadd.f32 0.0, %v224
    %v226 = vpop.f32.mrb[0].mxu0
    %v227 = vpop.f32.mrb[0].mxu0
    %v228 = vadd.f32 0.0, %v227
    %v229 = vpop.f32.mrb[0].mxu0
    %230 = vmatprep.mubr.bf16.mxu0 0
    %231 = vmatmul.mubr.bf16.gmra.mrb[0].mxu0 %v133
    %v232 = vpop.f32.mrb[0].mxu0
    %v233 = vadd.f32 0.0, %v232
    %v234 = vpop.f32.mrb[0].mxu0
    %v235 = vpop.f32.mrb[0].mxu0
    %v236 = vadd.f32 0.0, %v235
    %v237 = vpop.f32.mrb[0].mxu0
    %238 = vdwg.mxu0
    %s239 = scalar_lea.vmem [#allocation3], %s117
    %240 = vst [vmem:[%s239] sm:$0xff] %v177
    %241 = vst [vmem:[%s239 + $0x8] sm:$0xff] %v180
    %242 = vst [vmem:[%s239 + $0x10] sm:$0xff] %v185
    %243 = vst [vmem:[%s239 + $0x18] sm:$0xff] %v188
    %244 = vst [vmem:[%s239 + $0x20] sm:$0xff] %v193
    %245 = vst [vmem:[%s239 + $0x28] sm:$0xff] %v196
    %246 = vst [vmem:[%s239 + $0x30] sm:$0xff] %v201
    %247 = vst [vmem:[%s239 + $0x38] sm:$0xff] %v204
    %248 = vst [vmem:[%s239 + $0x40] sm:$0xff] %v209
    %249 = vst [vmem:[%s239 + $0x48] sm:$0xff] %v212
    %250 = vst [vmem:[%s239 + $0x50] sm:$0xff] %v217
    %251 = vst [vmem:[%s239 + $0x58] sm:$0xff] %v220
    %252 = vst [vmem:[%s239 + $0x60] sm:$0xff] %v225
    %253 = vst [vmem:[%s239 + $0x68] sm:$0xff] %v228
    %254 = vst [vmem:[%s239 + $0x70] sm:$0xff] %v233
    %255 = vst [vmem:[%s239 + $0x78] sm:$0xff] %v236
    %s256 = scalar_lea.vmem [#allocation7], %s117
    %v257 = vld [vmem:[%s256] sm:$0xff]
    %v258 = vld [vmem:[%s256 + $0x8] sm:$0xff]
    %v259 = vld [vmem:[%s256 + $0x10] sm:$0xff]
    %v260 = vld [vmem:[%s256 + $0x18] sm:$0xff]
    %v261 = vld [vmem:[%s256 + $0x20] sm:$0xff]
    %v262 = vld [vmem:[%s256 + $0x28] sm:$0xff]
    %v263 = vld [vmem:[%s256 + $0x30] sm:$0xff]
    %v264 = vld [vmem:[%s256 + $0x38] sm:$0xff]
    %v265 = vld [vmem:[%s256 + $0x40] sm:$0xff]
    %v266 = vld [vmem:[%s256 + $0x48] sm:$0xff]
    %v267 = vld [vmem:[%s256 + $0x50] sm:$0xff]
    %v268 = vld [vmem:[%s256 + $0x58] sm:$0xff]
    %v269 = vld [vmem:[%s256 + $0x60] sm:$0xff]
    %v270 = vld [vmem:[%s256 + $0x68] sm:$0xff]
    %v271 = vld [vmem:[%s256 + $0x70] sm:$0xff]
    %v272 = vld [vmem:[%s256 + $0x78] sm:$0xff]
    %v273 = vmul.f32 %v177, 0.33333334
    %v274 = vmul.f32 %v180, 0.33333334
    %v275 = vmul.f32 %v185, 0.33333334
    %v276 = vmul.f32 %v188, 0.33333334
    %v277 = vmul.f32 %v193, 0.33333334
    %v278 = vmul.f32 %v196, 0.33333334
    %v279 = vmul.f32 %v201, 0.33333334
    %v280 = vmul.f32 %v204, 0.33333334
    %v281 = vmul.f32 %v209, 0.33333334
    %v282 = vmul.f32 %v212, 0.33333334
    %v283 = vmul.f32 %v217, 0.33333334
    %v284 = vmul.f32 %v220, 0.33333334
    %v285 = vmul.f32 %v225, 0.33333334
    %v286 = vmul.f32 %v228, 0.33333334
    %v287 = vmul.f32 %v233, 0.33333334
    %v288 = vmul.f32 %v236, 0.33333334
    %v289 = vadd.f32 %v257, %v273
    %v290 = vadd.f32 %v258, %v274
    %v291 = vadd.f32 %v259, %v275
    %v292 = vadd.f32 %v260, %v276
    %v293 = vadd.f32 %v261, %v277
    %v294 = vadd.f32 %v262, %v278
    %v295 = vadd.f32 %v263, %v279
    %v296 = vadd.f32 %v264, %v280
    %v297 = vadd.f32 %v265, %v281
    %v298 = vadd.f32 %v266, %v282
    %v299 = vadd.f32 %v267, %v283
    %v300 = vadd.f32 %v268, %v284
    %v301 = vadd.f32 %v269, %v285
    %v302 = vadd.f32 %v270, %v286
    %v303 = vadd.f32 %v271, %v287
    %v304 = vadd.f32 %v272, %v288
    %v305 = vpack.c.bf16 %v290, %v289
    %v306 = vpack.c.bf16 %v292, %v291
    %v307 = vpack.c.bf16 %v294, %v293
    %v308 = vpack.c.bf16 %v296, %v295
    %v309 = vpack.c.bf16 %v298, %v297
    %v310 = vpack.c.bf16 %v300, %v299
    %v311 = vpack.c.bf16 %v302, %v301
    %v312 = vpack.c.bf16 %v304, %v303
    %s313 = sshra.s32 %s117, 4
    %s314 = sand.u32 %s117, 15
    %s315 = smul.addr %s313, 8
    %s316 = scalar_lea.vmem [#allocation5], %s315
    %317 = vst [vmem:[%s316] sm:$0xff] %v305
    %318 = vst [vmem:[%s316 + $0x8] sm:$0xff] %v306
    %319 = vst [vmem:[%s316 + $0x10] sm:$0xff] %v307
    %320 = vst [vmem:[%s316 + $0x18] sm:$0xff] %v308
    %321 = vst [vmem:[%s316 + $0x20] sm:$0xff] %v309
    %322 = vst [vmem:[%s316 + $0x28] sm:$0xff] %v310
    %323 = vst [vmem:[%s316 + $0x30] sm:$0xff] %v311
    %324 = vst [vmem:[%s316 + $0x38] sm:$0xff] %v312
    // Predicated region
    $region26: #{tpu_custom_call.1} parent=1 // pred_check
      %p325 = pneg %p25
    $region27: #{tpu_custom_call.1} parent=1 // pred_check_branch
      %327 = sbr.rel (%p325) target = $region29
    $region28: #{tpu_custom_call.1} parent=1 // pred_region
      %v328 = vld [vmem:[#allocation2] sm:$0xff]
      %v329 = vld [vmem:[#allocation2 + $0x8] sm:$0xff]
      %v330 = vld [vmem:[#allocation2 + $0x10] sm:$0xff]
      %v331 = vld [vmem:[#allocation2 + $0x18] sm:$0xff]
      %v332 = vld [vmem:[#allocation2 + $0x20] sm:$0xff]
      %v333 = vld [vmem:[#allocation2 + $0x28] sm:$0xff]
      %v334 = vld [vmem:[#allocation2 + $0x30] sm:$0xff]
      %v335 = vld [vmem:[#allocation2 + $0x38] sm:$0xff]
      %v336 = vld [vmem:[#allocation5] sm:$0xff]
      %v337 = vld [vmem:[#allocation5 + $0x8] sm:$0xff]
      %v338 = vld [vmem:[#allocation5 + $0x10] sm:$0xff]
      %v339 = vld [vmem:[#allocation5 + $0x18] sm:$0xff]
      %v340 = vld [vmem:[#allocation5 + $0x20] sm:$0xff]
      %v341 = vld [vmem:[#allocation5 + $0x28] sm:$0xff]
      %v342 = vld [vmem:[#allocation5 + $0x30] sm:$0xff]
      %v343 = vld [vmem:[#allocation5 + $0x38] sm:$0xff]
      %344 = vmatprep.subr.bf16.mxu0 0
      %345 = vmatpush1.bf16.msra.mxu0 %v336
      %346 = vmatprep.subr.bf16.mxu0 0
      %347 = vmatpush1.bf16.msra.mxu0 %v337
      %348 = vmatprep.subr.bf16.mxu0 0
      %349 = vmatpush1.bf16.msra.mxu0 %v338
      %350 = vmatprep.subr.bf16.mxu0 0
      %351 = vmatpush1.bf16.msra.mxu0 %v339
      %352 = vmatprep.subr.bf16.mxu0 0
      %353 = vmatpush1.bf16.msra.mxu0 %v340
      %354 = vmatprep.subr.bf16.mxu0 0
      %355 = vmatpush1.bf16.msra.mxu0 %v341
      %356 = vmatprep.subr.bf16.mxu0 0
      %357 = vmatpush1.bf16.msra.mxu0 %v342
      %358 = vmatprep.subr.bf16.mxu0 0
      %359 = vmatpush1.bf16.msra.mxu0 %v343
      %360 = vmatprep.subr.bf16.mxu0 0
      %361 = vmatpush1.bf16.msra.mxu0 0
      %362 = vmatprep.subr.bf16.mxu0 0
      %363 = vmatpush1.bf16.msra.mxu0 0
      %364 = vmatprep.subr.bf16.mxu0 0
      %365 = vmatpush1.bf16.msra.mxu0 0
      %366 = vmatprep.subr.bf16.mxu0 0
      %367 = vmatpush1.bf16.msra.mxu0 0
      %368 = vmatprep.subr.bf16.mxu0 0
      %369 = vmatpush1.bf16.msra.mxu0 0
      %370 = vmatprep.subr.bf16.mxu0 0
      %371 = vmatpush1.bf16.msra.mxu0 0
      %372 = vmatprep.subr.bf16.mxu0 0
      %373 = vmatpush1.bf16.msra.mxu0 0
      %374 = vmatprep.subr.bf16.mxu0 0
      %375 = vmatpush1.bf16.msra.mxu0 0
      %376 = vmatprep.mubr.bf16.mxu0 0
      %377 = vmatmul.mubr.bf16.gmra.mrb[0].mxu0 %v328
      %v378 = vpop.f32.mrb[0].mxu0
      %v379 = vadd.f32 0.0, %v378
      %v380 = vpop.f32.mrb[0].mxu0
      %v381 = vpop.f32.mrb[0].mxu0
      %v382 = vadd.f32 0.0, %v381
      %v383 = vpop.f32.mrb[0].mxu0
      %384 = vmatprep.mubr.bf16.mxu0 0
      %385 = vmatmul.mubr.bf16.gmra.mrb[0].mxu0 %v329
      %v386 = vpop.f32.mrb[0].mxu0
      %v387 = vadd.f32 0.0, %v386
      %v388 = vpop.f32.mrb[0].mxu0
      %v389 = vpop.f32.mrb[0].mxu0
      %v390 = vadd.f32 0.0, %v389
      %v391 = vpop.f32.mrb[0].mxu0
      %392 = vmatprep.mubr.bf16.mxu0 0
      %393 = vmatmul.mubr.bf16.gmra.mrb[0].mxu0 %v330
      %v394 = vpop.f32.mrb[0].mxu0
      %v395 = vadd.f32 0.0, %v394
      %v396 = vpop.f32.mrb[0].mxu0
      %v397 = vpop.f32.mrb[0].mxu0
      %v398 = vadd.f32 0.0, %v397
      %v399 = vpop.f32.mrb[0].mxu0
      %400 = vmatprep.mubr.bf16.mxu0 0
      %401 = vmatmul.mubr.bf16.gmra.mrb[0].mxu0 %v331
      %v402 = vpop.f32.mrb[0].mxu0
      %v403 = vadd.f32 0.0, %v402
      %v404 = vpop.f32.mrb[0].mxu0
      %v405 = vpop.f32.mrb[0].mxu0
      %v406 = vadd.f32 0.0, %v405
      %v407 = vpop.f32.mrb[0].mxu0
      %408 = vmatprep.mubr.bf16.mxu0 0
      %409 = vmatmul.mubr.bf16.gmra.mrb[0].mxu0 %v332
      %v410 = vpop.f32.mrb[0].mxu0
      %v411 = vadd.f32 0.0, %v410
      %v412 = vpop.f32.mrb[0].mxu0
      %v413 = vpop.f32.mrb[0].mxu0
      %v414 = vadd.f32 0.0, %v413
      %v415 = vpop.f32.mrb[0].mxu0
      %416 = vmatprep.mubr.bf16.mxu0 0
      %417 = vmatmul.mubr.bf16.gmra.mrb[0].mxu0 %v333
      %v418 = vpop.f32.mrb[0].mxu0
      %v419 = vadd.f32 0.0, %v418
      %v420 = vpop.f32.mrb[0].mxu0
      %v421 = vpop.f32.mrb[0].mxu0
      %v422 = vadd.f32 0.0, %v421
      %v423 = vpop.f32.mrb[0].mxu0
      %424 = vmatprep.mubr.bf16.mxu0 0
      %425 = vmatmul.mubr.bf16.gmra.mrb[0].mxu0 %v334
      %v426 = vpop.f32.mrb[0].mxu0
      %v427 = vadd.f32 0.0, %v426
      %v428 = vpop.f32.mrb[0].mxu0
      %v429 = vpop.f32.mrb[0].mxu0
      %v430 = vadd.f32 0.0, %v429
      %v431 = vpop.f32.mrb[0].mxu0
      %432 = vmatprep.mubr.bf16.mxu0 0
      %433 = vmatmul.mubr.bf16.gmra.mrb[0].mxu0 %v335
      %v434 = vpop.f32.mrb[0].mxu0
      %v435 = vadd.f32 0.0, %v434
      %v436 = vpop.f32.mrb[0].mxu0
      %v437 = vpop.f32.mrb[0].mxu0
      %v438 = vadd.f32 0.0, %v437
      %v439 = vpop.f32.mrb[0].mxu0
      %440 = vdwg.mxu0
      %v441 = vld [vmem:[#allocation3] sm:$0xff]
      %v442 = vld [vmem:[#allocation3 + $0x8] sm:$0xff]
      %v443 = vld [vmem:[#allocation3 + $0x10] sm:$0xff]
      %v444 = vld [vmem:[#allocation3 + $0x18] sm:$0xff]
      %v445 = vld [vmem:[#allocation3 + $0x20] sm:$0xff]
      %v446 = vld [vmem:[#allocation3 + $0x28] sm:$0xff]
      %v447 = vld [vmem:[#allocation3 + $0x30] sm:$0xff]
      %v448 = vld [vmem:[#allocation3 + $0x38] sm:$0xff]
      %v449 = vld [vmem:[#allocation3 + $0x40] sm:$0xff]
      %v450 = vld [vmem:[#allocation3 + $0x48] sm:$0xff]
      %v451 = vld [vmem:[#allocation3 + $0x50] sm:$0xff]
      %v452 = vld [vmem:[#allocation3 + $0x58] sm:$0xff]
      %v453 = vld [vmem:[#allocation3 + $0x60] sm:$0xff]
      %v454 = vld [vmem:[#allocation3 + $0x68] sm:$0xff]
      %v455 = vld [vmem:[#allocation3 + $0x70] sm:$0xff]
      %v456 = vld [vmem:[#allocation3 + $0x78] sm:$0xff]
      %v457 = vld [vmem:[#allocation7] sm:$0xff]
      %v458 = vld [vmem:[#allocation7 + $0x8] sm:$0xff]
      %v459 = vld [vmem:[#allocation7 + $0x10] sm:$0xff]
      %v460 = vld [vmem:[#allocation7 + $0x18] sm:$0xff]
      %v461 = vld [vmem:[#allocation7 + $0x20] sm:$0xff]
      %v462 = vld [vmem:[#allocation7 + $0x28] sm:$0xff]
      %v463 = vld [vmem:[#allocation7 + $0x30] sm:$0xff]
      %v464 = vld [vmem:[#allocation7 + $0x38] sm:$0xff]
      %v465 = vld [vmem:[#allocation7 + $0x40] sm:$0xff]
      %v466 = vld [vmem:[#allocation7 + $0x48] sm:$0xff]
      %v467 = vld [vmem:[#allocation7 + $0x50] sm:$0xff]
      %v468 = vld [vmem:[#allocation7 + $0x58] sm:$0xff]
      %v469 = vld [vmem:[#allocation7 + $0x60] sm:$0xff]
      %v470 = vld [vmem:[#allocation7 + $0x68] sm:$0xff]
      %v471 = vld [vmem:[#allocation7 + $0x70] sm:$0xff]
      %v472 = vld [vmem:[#allocation7 + $0x78] sm:$0xff]
      %v473 = vmul.f32 %v379, 3.0
      %v474 = vmul.f32 %v382, 3.0
      %v475 = vmul.f32 %v387, 3.0
      %v476 = vmul.f32 %v390, 3.0
      %v477 = vmul.f32 %v395, 3.0
      %v478 = vmul.f32 %v398, 3.0
      %v479 = vmul.f32 %v403, 3.0
      %v480 = vmul.f32 %v406, 3.0
      %v481 = vmul.f32 %v411, 3.0
      %v482 = vmul.f32 %v414, 3.0
      %v483 = vmul.f32 %v419, 3.0
      %v484 = vmul.f32 %v422, 3.0
      %v485 = vmul.f32 %v427, 3.0
      %v486 = vmul.f32 %v430, 3.0
      %v487 = vmul.f32 %v435, 3.0
      %v488 = vmul.f32 %v438, 3.0
      %v489 = vadd.f32 %v441, %v473
      %v490 = vadd.f32 %v442, %v474
      %v491 = vadd.f32 %v443, %v475
      %v492 = vadd.f32 %v444, %v476
      %v493 = vadd.f32 %v445, %v477
      %v494 = vadd.f32 %v446, %v478
      %v495 = vadd.f32 %v447, %v479
      %v496 = vadd.f32 %v448, %v480
      %v497 = vadd.f32 %v449, %v481
      %v498 = vadd.f32 %v450, %v482
      %v499 = vadd.f32 %v451, %v483
      %v500 = vadd.f32 %v452, %v484
      %v501 = vadd.f32 %v453, %v485
      %v502 = vadd.f32 %v454, %v486
      %v503 = vadd.f32 %v455, %v487
      %v504 = vadd.f32 %v456, %v488
      %505 = vst [vmem:[#allocation10] sm:$0xff] %v489
      %506 = vst [vmem:[#allocation10 + $0x8] sm:$0xff] %v490
      %507 = vst [vmem:[#allocation10 + $0x10] sm:$0xff] %v491
      %508 = vst [vmem:[#allocation10 + $0x18] sm:$0xff] %v492
      %509 = vst [vmem:[#allocation10 + $0x20] sm:$0xff] %v493
      %510 = vst [vmem:[#allocation10 + $0x28] sm:$0xff] %v494
      %511 = vst [vmem:[#allocation10 + $0x30] sm:$0xff] %v495
      %512 = vst [vmem:[#allocation10 + $0x38] sm:$0xff] %v496
      %513 = vst [vmem:[#allocation10 + $0x40] sm:$0xff] %v497
      %514 = vst [vmem:[#allocation10 + $0x48] sm:$0xff] %v498
      %515 = vst [vmem:[#allocation10 + $0x50] sm:$0xff] %v499
      %516 = vst [vmem:[#allocation10 + $0x58] sm:$0xff] %v500
      %517 = vst [vmem:[#allocation10 + $0x60] sm:$0xff] %v501
      %518 = vst [vmem:[#allocation10 + $0x68] sm:$0xff] %v502
      %519 = vst [vmem:[#allocation10 + $0x70] sm:$0xff] %v503
      %520 = vst [vmem:[#allocation10 + $0x78] sm:$0xff] %v504
      %v521 = vsub.f32 %v441, %v379
      %v522 = vsub.f32 %v442, %v382
      %v523 = vsub.f32 %v443, %v387
      %v524 = vsub.f32 %v444, %v390
      %v525 = vsub.f32 %v445, %v395
      %v526 = vsub.f32 %v446, %v398
      %v527 = vsub.f32 %v447, %v403
      %v528 = vsub.f32 %v448, %v406
      %v529 = vsub.f32 %v449, %v411
      %v530 = vsub.f32 %v450, %v414
      %v531 = vsub.f32 %v451, %v419
      %v532 = vsub.f32 %v452, %v422
      %v533 = vsub.f32 %v453, %v427
      %v534 = vsub.f32 %v454, %v430
      %v535 = vsub.f32 %v455, %v435
      %v536 = vsub.f32 %v456, %v438
      %537 = vst [vmem:[#allocation3] sm:$0xff] %v521
      %538 = vst [vmem:[#allocation3 + $0x8] sm:$0xff] %v522
      %539 = vst [vmem:[#allocation3 + $0x10] sm:$0xff] %v523
      %540 = vst [vmem:[#allocation3 + $0x18] sm:$0xff] %v524
      %541 = vst [vmem:[#allocation3 + $0x20] sm:$0xff] %v525
      %542 = vst [vmem:[#allocation3 + $0x28] sm:$0xff] %v526
      %543 = vst [vmem:[#allocation3 + $0x30] sm:$0xff] %v527
      %544 = vst [vmem:[#allocation3 + $0x38] sm:$0xff] %v528
      %545 = vst [vmem:[#allocation3 + $0x40] sm:$0xff] %v529
      %546 = vst [vmem:[#allocation3 + $0x48] sm:$0xff] %v530
      %547 = vst [vmem:[#allocation3 + $0x50] sm:$0xff] %v531
      %548 = vst [vmem:[#allocation3 + $0x58] sm:$0xff] %v532
      %549 = vst [vmem:[#allocation3 + $0x60] sm:$0xff] %v533
      %550 = vst [vmem:[#allocation3 + $0x68] sm:$0xff] %v534
      %551 = vst [vmem:[#allocation3 + $0x70] sm:$0xff] %v535
      %552 = vst [vmem:[#allocation3 + $0x78] sm:$0xff] %v536
      %v553 = vmul.f32 %v441, 0.33333334
      %v554 = vmul.f32 %v442, 0.33333334
      %v555 = vmul.f32 %v443, 0.33333334
      %v556 = vmul.f32 %v444, 0.33333334
      %v557 = vmul.f32 %v445, 0.33333334
      %v558 = vmul.f32 %v446, 0.33333334
      %v559 = vmul.f32 %v447, 0.33333334
      %v560 = vmul.f32 %v448, 0.33333334
      %v561 = vmul.f32 %v449, 0.33333334
      %v562 = vmul.f32 %v450, 0.33333334
      %v563 = vmul.f32 %v451, 0.33333334
      %v564 = vmul.f32 %v452, 0.33333334
      %v565 = vmul.f32 %v453, 0.33333334
      %v566 = vmul.f32 %v454, 0.33333334
      %v567 = vmul.f32 %v455, 0.33333334
      %v568 = vmul.f32 %v456, 0.33333334
      %v569 = vsub.f32 %v379, %v553
      %v570 = vsub.f32 %v382, %v554
      %v571 = vsub.f32 %v387, %v555
      %v572 = vsub.f32 %v390, %v556
      %v573 = vsub.f32 %v395, %v557
      %v574 = vsub.f32 %v398, %v558
      %v575 = vsub.f32 %v403, %v559
      %v576 = vsub.f32 %v406, %v560
      %v577 = vsub.f32 %v411, %v561
      %v578 = vsub.f32 %v414, %v562
      %v579 = vsub.f32 %v419, %v563
      %v580 = vsub.f32 %v422, %v564
      %v581 = vsub.f32 %v427, %v565
      %v582 = vsub.f32 %v430, %v566
      %v583 = vsub.f32 %v435, %v567
      %v584 = vsub.f32 %v438, %v568
      %v585 = vadd.f32 %v457, %v569
      %v586 = vadd.f32 %v458, %v570
      %v587 = vadd.f32 %v459, %v571
      %v588 = vadd.f32 %v460, %v572
      %v589 = vadd.f32 %v461, %v573
      %v590 = vadd.f32 %v462, %v574
      %v591 = vadd.f32 %v463, %v575
      %v592 = vadd.f32 %v464, %v576
      %v593 = vadd.f32 %v465, %v577
      %v594 = vadd.f32 %v466, %v578
      %v595 = vadd.f32 %v467, %v579
      %v596 = vadd.f32 %v468, %v580
      %v597 = vadd.f32 %v469, %v581
      %v598 = vadd.f32 %v470, %v582
      %v599 = vadd.f32 %v471, %v583
      %v600 = vadd.f32 %v472, %v584
      %v601 = vpack.c.bf16 %v586, %v585
      %v602 = vpack.c.bf16 %v588, %v587
      %v603 = vpack.c.bf16 %v590, %v589
      %v604 = vpack.c.bf16 %v592, %v591
      %v605 = vpack.c.bf16 %v594, %v593
      %v606 = vpack.c.bf16 %v596, %v595
      %v607 = vpack.c.bf16 %v598, %v597
      %v608 = vpack.c.bf16 %v600, %v599
      %609 = vst [vmem:[#allocation4] sm:$0xff] %v601
      %610 = vst [vmem:[#allocation4 + $0x8] sm:$0xff] %v602
      %611 = vst [vmem:[#allocation4 + $0x10] sm:$0xff] %v603
      %612 = vst [vmem:[#allocation4 + $0x18] sm:$0xff] %v604
      %613 = vst [vmem:[#allocation4 + $0x20] sm:$0xff] %v605
      %614 = vst [vmem:[#allocation4 + $0x28] sm:$0xff] %v606
      %615 = vst [vmem:[#allocation4 + $0x30] sm:$0xff] %v607
      %616 = vst [vmem:[#allocation4 + $0x38] sm:$0xff] %v608
      %v617 = vld [vmem:[#allocation2] sm:$0xff]
      %v618 = vld [vmem:[#allocation2 + $0x8] sm:$0xff]
      %v619 = vld [vmem:[#allocation2 + $0x10] sm:$0xff]
      %v620 = vld [vmem:[#allocation2 + $0x18] sm:$0xff]
      %v621 = vld [vmem:[#allocation2 + $0x20] sm:$0xff]
      %v622 = vld [vmem:[#allocation2 + $0x28] sm:$0xff]
      %v623 = vld [vmem:[#allocation2 + $0x30] sm:$0xff]
      %v624 = vld [vmem:[#allocation2 + $0x38] sm:$0xff]
      %v625 = vld [vmem:[#allocation4] sm:$0xff]
      %v626 = vld [vmem:[#allocation4 + $0x8] sm:$0xff]
      %v627 = vld [vmem:[#allocation4 + $0x10] sm:$0xff]
      %v628 = vld [vmem:[#allocation4 + $0x18] sm:$0xff]
      %v629 = vld [vmem:[#allocation4 + $0x20] sm:$0xff]
      %v630 = vld [vmem:[#allocation4 + $0x28] sm:$0xff]
      %v631 = vld [vmem:[#allocation4 + $0x30] sm:$0xff]
      %v632 = vld [vmem:[#allocation4 + $0x38] sm:$0xff]
      %633 = vmatprep.subr.bf16.mxu0 0
      %634 = vmatpush1.bf16.msra.mxu0 %v625
      %635 = vmatprep.subr.bf16.mxu0 0
      %636 = vmatpush1.bf16.msra.mxu0 %v626
      %637 = vmatprep.subr.bf16.mxu0 0
      %638 = vmatpush1.bf16.msra.mxu0 %v627
      %639 = vmatprep.subr.bf16.mxu0 0
      %640 = vmatpush1.bf16.msra.mxu0 %v628
      %641 = vmatprep.subr.bf16.mxu0 0
      %642 = vmatpush1.bf16.msra.mxu0 %v629
      %643 = vmatprep.subr.bf16.mxu0 0
      %644 = vmatpush1.bf16.msra.mxu0 %v630
      %645 = vmatprep.subr.bf16.mxu0 0
      %646 = vmatpush1.bf16.msra.mxu0 %v631
      %647 = vmatprep.subr.bf16.mxu0 0
      %648 = vmatpush1.bf16.msra.mxu0 %v632
      %649 = vmatprep.subr.bf16.mxu0 0
      %650 = vmatpush1.bf16.msra.mxu0 0
      %651 = vmatprep.subr.bf16.mxu0 0
      %652 = vmatpush1.bf16.msra.mxu0 0
      %653 = vmatprep.subr.bf16.mxu0 0
      %654 = vmatpush1.bf16.msra.mxu0 0
      %655 = vmatprep.subr.bf16.mxu0 0
      %656 = vmatpush1.bf16.msra.mxu0 0
      %657 = vmatprep.subr.bf16.mxu0 0
      %658 = vmatpush1.bf16.msra.mxu0 0
      %659 = vmatprep.subr.bf16.mxu0 0
      %660 = vmatpush1.bf16.msra.mxu0 0
      %661 = vmatprep.subr.bf16.mxu0 0
      %662 = vmatpush1.bf16.msra.mxu0 0
      %663 = vmatprep.subr.bf16.mxu0 0
      %664 = vmatpush1.bf16.msra.mxu0 0
      %665 = vmatprep.mubr.bf16.mxu0 0
      %666 = vmatmul.mubr.bf16.gmra.mrb[0].mxu0 %v617
      %v667 = vpop.f32.mrb[0].mxu0
      %v668 = vadd.f32 0.0, %v667
      %v669 = vpop.f32.mrb[0].mxu0
      %v670 = vpop.f32.mrb[0].mxu0
      %v671 = vadd.f32 0.0, %v670
      %v672 = vpop.f32.mrb[0].mxu0
      %673 = vmatprep.mubr.bf16.mxu0 0
      %674 = vmatmul.mubr.bf16.gmra.mrb[0].mxu0 %v618
      %v675 = vpop.f32.mrb[0].mxu0
      %v676 = vadd.f32 0.0, %v675
      %v677 = vpop.f32.mrb[0].mxu0
      %v678 = vpop.f32.mrb[0].mxu0
      %v679 = vadd.f32 0.0, %v678
      %v680 = vpop.f32.mrb[0].mxu0
      %681 = vmatprep.mubr.bf16.mxu0 0
      %682 = vmatmul.mubr.bf16.gmra.mrb[0].mxu0 %v619
      %v683 = vpop.f32.mrb[0].mxu0
      %v684 = vadd.f32 0.0, %v683
      %v685 = vpop.f32.mrb[0].mxu0
      %v686 = vpop.f32.mrb[0].mxu0
      %v687 = vadd.f32 0.0, %v686
      %v688 = vpop.f32.mrb[0].mxu0
      %689 = vmatprep.mubr.bf16.mxu0 0
      %690 = vmatmul.mubr.bf16.gmra.mrb[0].mxu0 %v620
      %v691 = vpop.f32.mrb[0].mxu0
      %v692 = vadd.f32 0.0, %v691
      %v693 = vpop.f32.mrb[0].mxu0
      %v694 = vpop.f32.mrb[0].mxu0
      %v695 = vadd.f32 0.0, %v694
      %v696 = vpop.f32.mrb[0].mxu0
      %697 = vmatprep.mubr.bf16.mxu0 0
      %698 = vmatmul.mubr.bf16.gmra.mrb[0].mxu0 %v621
      %v699 = vpop.f32.mrb[0].mxu0
      %v700 = vadd.f32 0.0, %v699
      %v701 = vpop.f32.mrb[0].mxu0
      %v702 = vpop.f32.mrb[0].mxu0
      %v703 = vadd.f32 0.0, %v702
      %v704 = vpop.f32.mrb[0].mxu0
      %705 = vmatprep.mubr.bf16.mxu0 0
      %706 = vmatmul.mubr.bf16.gmra.mrb[0].mxu0 %v622
      %v707 = vpop.f32.mrb[0].mxu0
      %v708 = vadd.f32 0.0, %v707
      %v709 = vpop.f32.mrb[0].mxu0
      %v710 = vpop.f32.mrb[0].mxu0
      %v711 = vadd.f32 0.0, %v710
      %v712 = vpop.f32.mrb[0].mxu0
      %713 = vmatprep.mubr.bf16.mxu0 0
      %714 = vmatmul.mubr.bf16.gmra.mrb[0].mxu0 %v623
      %v715 = vpop.f32.mrb[0].mxu0
      %v716 = vadd.f32 0.0, %v715
      %v717 = vpop.f32.mrb[0].mxu0
      %v718 = vpop.f32.mrb[0].mxu0
      %v719 = vadd.f32 0.0, %v718
      %v720 = vpop.f32.mrb[0].mxu0
      %721 = vmatprep.mubr.bf16.mxu0 0
      %722 = vmatmul.mubr.bf16.gmra.mrb[0].mxu0 %v624
      %v723 = vpop.f32.mrb[0].mxu0
      %v724 = vadd.f32 0.0, %v723
      %v725 = vpop.f32.mrb[0].mxu0
      %v726 = vpop.f32.mrb[0].mxu0
      %v727 = vadd.f32 0.0, %v726
      %v728 = vpop.f32.mrb[0].mxu0
      %729 = vdwg.mxu0
      %v730 = vld [vmem:[#allocation7] sm:$0xff]
      %v731 = vld [vmem:[#allocation7 + $0x8] sm:$0xff]
      %v732 = vld [vmem:[#allocation7 + $0x10] sm:$0xff]
      %v733 = vld [vmem:[#allocation7 + $0x18] sm:$0xff]
      %v734 = vld [vmem:[#allocation7 + $0x20] sm:$0xff]
      %v735 = vld [vmem:[#allocation7 + $0x28] sm:$0xff]
      %v736 = vld [vmem:[#allocation7 + $0x30] sm:$0xff]
      %v737 = vld [vmem:[#allocation7 + $0x38] sm:$0xff]
      %v738 = vld [vmem:[#allocation7 + $0x40] sm:$0xff]
      %v739 = vld [vmem:[#allocation7 + $0x48] sm:$0xff]
      %v740 = vld [vmem:[#allocation7 + $0x50] sm:$0xff]
      %v741 = vld [vmem:[#allocation7 + $0x58] sm:$0xff]
      %v742 = vld [vmem:[#allocation7 + $0x60] sm:$0xff]
      %v743 = vld [vmem:[#allocation7 + $0x68] sm:$0xff]
      %v744 = vld [vmem:[#allocation7 + $0x70] sm:$0xff]
      %v745 = vld [vmem:[#allocation7 + $0x78] sm:$0xff]
      %v746 = vld [vmem:[#allocation10] sm:$0xff]
      %v747 = vld [vmem:[#allocation10 + $0x8] sm:$0xff]
      %v748 = vld [vmem:[#allocation10 + $0x10] sm:$0xff]
      %v749 = vld [vmem:[#allocation10 + $0x18] sm:$0xff]
      %v750 = vld [vmem:[#allocation10 + $0x20] sm:$0xff]
      %v751 = vld [vmem:[#allocation10 + $0x28] sm:$0xff]
      %v752 = vld [vmem:[#allocation10 + $0x30] sm:$0xff]
      %v753 = vld [vmem:[#allocation10 + $0x38] sm:$0xff]
      %v754 = vld [vmem:[#allocation10 + $0x40] sm:$0xff]
      %v755 = vld [vmem:[#allocation10 + $0x48] sm:$0xff]
      %v756 = vld [vmem:[#allocation10 + $0x50] sm:$0xff]
      %v757 = vld [vmem:[#allocation10 + $0x58] sm:$0xff]
      %v758 = vld [vmem:[#allocation10 + $0x60] sm:$0xff]
      %v759 = vld [vmem:[#allocation10 + $0x68] sm:$0xff]
      %v760 = vld [vmem:[#allocation10 + $0x70] sm:$0xff]
      %v761 = vld [vmem:[#allocation10 + $0x78] sm:$0xff]
      %v762 = vmul.f32 %v668, 3.0
      %v763 = vmul.f32 %v671, 3.0
      %v764 = vmul.f32 %v676, 3.0
      %v765 = vmul.f32 %v679, 3.0
      %v766 = vmul.f32 %v684, 3.0
      %v767 = vmul.f32 %v687, 3.0
      %v768 = vmul.f32 %v692, 3.0
      %v769 = vmul.f32 %v695, 3.0
      %v770 = vmul.f32 %v700, 3.0
      %v771 = vmul.f32 %v703, 3.0
      %v772 = vmul.f32 %v708, 3.0
      %v773 = vmul.f32 %v711, 3.0
      %v774 = vmul.f32 %v716, 3.0
      %v775 = vmul.f32 %v719, 3.0
      %v776 = vmul.f32 %v724, 3.0
      %v777 = vmul.f32 %v727, 3.0
      %v778 = vadd.f32 %v746, %v762
      %v779 = vadd.f32 %v747, %v763
      %v780 = vadd.f32 %v748, %v764
      %v781 = vadd.f32 %v749, %v765
      %v782 = vadd.f32 %v750, %v766
      %v783 = vadd.f32 %v751, %v767
      %v784 = vadd.f32 %v752, %v768
      %v785 = vadd.f32 %v753, %v769
      %v786 = vadd.f32 %v754, %v770
      %v787 = vadd.f32 %v755, %v771
      %v788 = vadd.f32 %v756, %v772
      %v789 = vadd.f32 %v757, %v773
      %v790 = vadd.f32 %v758, %v774
      %v791 = vadd.f32 %v759, %v775
      %v792 = vadd.f32 %v760, %v776
      %v793 = vadd.f32 %v761, %v777
      %794 = vst [vmem:[#allocation10] sm:$0xff] %v778
      %795 = vst [vmem:[#allocation10 + $0x8] sm:$0xff] %v779
      %796 = vst [vmem:[#allocation10 + $0x10] sm:$0xff] %v780
      %797 = vst [vmem:[#allocation10 + $0x18] sm:$0xff] %v781
      %798 = vst [vmem:[#allocation10 + $0x20] sm:$0xff] %v782
      %799 = vst [vmem:[#allocation10 + $0x28] sm:$0xff] %v783
      %800 = vst [vmem:[#allocation10 + $0x30] sm:$0xff] %v784
      %801 = vst [vmem:[#allocation10 + $0x38] sm:$0xff] %v785
      %802 = vst [vmem:[#allocation10 + $0x40] sm:$0xff] %v786
      %803 = vst [vmem:[#allocation10 + $0x48] sm:$0xff] %v787
      %804 = vst [vmem:[#allocation10 + $0x50] sm:$0xff] %v788
      %805 = vst [vmem:[#allocation10 + $0x58] sm:$0xff] %v789
      %806 = vst [vmem:[#allocation10 + $0x60] sm:$0xff] %v790
      %807 = vst [vmem:[#allocation10 + $0x68] sm:$0xff] %v791
      %808 = vst [vmem:[#allocation10 + $0x70] sm:$0xff] %v792
      %809 = vst [vmem:[#allocation10 + $0x78] sm:$0xff] %v793
      %v810 = vld [vmem:[#allocation3] sm:$0xff]
      %v811 = vld [vmem:[#allocation3 + $0x8] sm:$0xff]
      %v812 = vld [vmem:[#allocation3 + $0x10] sm:$0xff]
      %v813 = vld [vmem:[#allocation3 + $0x18] sm:$0xff]
      %v814 = vld [vmem:[#allocation3 + $0x20] sm:$0xff]
      %v815 = vld [vmem:[#allocation3 + $0x28] sm:$0xff]
      %v816 = vld [vmem:[#allocation3 + $0x30] sm:$0xff]
      %v817 = vld [vmem:[#allocation3 + $0x38] sm:$0xff]
      %v818 = vld [vmem:[#allocation3 + $0x40] sm:$0xff]
      %v819 = vld [vmem:[#allocation3 + $0x48] sm:$0xff]
      %v820 = vld [vmem:[#allocation3 + $0x50] sm:$0xff]
      %v821 = vld [vmem:[#allocation3 + $0x58] sm:$0xff]
      %v822 = vld [vmem:[#allocation3 + $0x60] sm:$0xff]
      %v823 = vld [vmem:[#allocation3 + $0x68] sm:$0xff]
      %v824 = vld [vmem:[#allocation3 + $0x70] sm:$0xff]
      %v825 = vld [vmem:[#allocation3 + $0x78] sm:$0xff]
      %v826 = vadd.f32 %v810, %v668
      %v827 = vadd.f32 %v811, %v671
      %v828 = vadd.f32 %v812, %v676
      %v829 = vadd.f32 %v813, %v679
      %v830 = vadd.f32 %v814, %v684
      %v831 = vadd.f32 %v815, %v687
      %v832 = vadd.f32 %v816, %v692
      %v833 = vadd.f32 %v817, %v695
      %v834 = vadd.f32 %v818, %v700
      %v835 = vadd.f32 %v819, %v703
      %v836 = vadd.f32 %v820, %v708
      %v837 = vadd.f32 %v821, %v711
      %v838 = vadd.f32 %v822, %v716
      %v839 = vadd.f32 %v823, %v719
      %v840 = vadd.f32 %v824, %v724
      %v841 = vadd.f32 %v825, %v727
      %v842 = vadd.f32 %v730, %v826
      %v843 = vadd.f32 %v731, %v827
      %v844 = vadd.f32 %v732, %v828
      %v845 = vadd.f32 %v733, %v829
      %v846 = vadd.f32 %v734, %v830
      %v847 = vadd.f32 %v735, %v831
      %v848 = vadd.f32 %v736, %v832
      %v849 = vadd.f32 %v737, %v833
      %v850 = vadd.f32 %v738, %v834
      %v851 = vadd.f32 %v739, %v835
      %v852 = vadd.f32 %v740, %v836
      %v853 = vadd.f32 %v741, %v837
      %v854 = vadd.f32 %v742, %v838
      %v855 = vadd.f32 %v743, %v839
      %v856 = vadd.f32 %v744, %v840
      %v857 = vadd.f32 %v745, %v841
      %v858 = vpack.c.bf16 %v843, %v842
      %v859 = vpack.c.bf16 %v845, %v844
      %v860 = vpack.c.bf16 %v847, %v846
      %v861 = vpack.c.bf16 %v849, %v848
      %v862 = vpack.c.bf16 %v851, %v850
      %v863 = vpack.c.bf16 %v853, %v852
      %v864 = vpack.c.bf16 %v855, %v854
      %v865 = vpack.c.bf16 %v857, %v856
      %866 = vst [vmem:[#allocation5] sm:$0xff] %v858
      %867 = vst [vmem:[#allocation5 + $0x8] sm:$0xff] %v859
      %868 = vst [vmem:[#allocation5 + $0x10] sm:$0xff] %v860
      %869 = vst [vmem:[#allocation5 + $0x18] sm:$0xff] %v861
      %870 = vst [vmem:[#allocation5 + $0x20] sm:$0xff] %v862
      %871 = vst [vmem:[#allocation5 + $0x28] sm:$0xff] %v863
      %872 = vst [vmem:[#allocation5 + $0x30] sm:$0xff] %v864
      %873 = vst [vmem:[#allocation5 + $0x38] sm:$0xff] %v865
      %v874 = vld [vmem:[#allocation2] sm:$0xff]
      %v875 = vld [vmem:[#allocation2 + $0x8] sm:$0xff]
      %v876 = vld [vmem:[#allocation2 + $0x10] sm:$0xff]
      %v877 = vld [vmem:[#allocation2 + $0x18] sm:$0xff]
      %v878 = vld [vmem:[#allocation2 + $0x20] sm:$0xff]
      %v879 = vld [vmem:[#allocation2 + $0x28] sm:$0xff]
      %v880 = vld [vmem:[#allocation2 + $0x30] sm:$0xff]
      %v881 = vld [vmem:[#allocation2 + $0x38] sm:$0xff]
      %v882 = vld [vmem:[#allocation5] sm:$0xff]
      %v883 = vld [vmem:[#allocation5 + $0x8] sm:$0xff]
      %v884 = vld [vmem:[#allocation5 + $0x10] sm:$0xff]
      %v885 = vld [vmem:[#allocation5 + $0x18] sm:$0xff]
      %v886 = vld [vmem:[#allocation5 + $0x20] sm:$0xff]
      %v887 = vld [vmem:[#allocation5 + $0x28] sm:$0xff]
      %v888 = vld [vmem:[#allocation5 + $0x30] sm:$0xff]
      %v889 = vld [vmem:[#allocation5 + $0x38] sm:$0xff]
      %890 = vmatprep.subr.bf16.mxu0 0
      %891 = vmatpush1.bf16.msra.mxu0 %v882
      %892 = vmatprep.subr.bf16.mxu0 0
      %893 = vmatpush1.bf16.msra.mxu0 %v883
      %894 = vmatprep.subr.bf16.mxu0 0
      %895 = vmatpush1.bf16.msra.mxu0 %v884
      %896 = vmatprep.subr.bf16.mxu0 0
      %897 = vmatpush1.bf16.msra.mxu0 %v885
      %898 = vmatprep.subr.bf16.mxu0 0
      %899 = vmatpush1.bf16.msra.mxu0 %v886
      %900 = vmatprep.subr.bf16.mxu0 0
      %901 = vmatpush1.bf16.msra.mxu0 %v887
      %902 = vmatprep.subr.bf16.mxu0 0
      %903 = vmatpush1.bf16.msra.mxu0 %v888
      %904 = vmatprep.subr.bf16.mxu0 0
      %905 = vmatpush1.bf16.msra.mxu0 %v889
      %906 = vmatprep.subr.bf16.mxu0 0
      %907 = vmatpush1.bf16.msra.mxu0 0
      %908 = vmatprep.subr.bf16.mxu0 0
      %909 = vmatpush1.bf16.msra.mxu0 0
      %910 = vmatprep.subr.bf16.mxu0 0
      %911 = vmatpush1.bf16.msra.mxu0 0
      %912 = vmatprep.subr.bf16.mxu0 0
      %913 = vmatpush1.bf16.msra.mxu0 0
      %914 = vmatprep.subr.bf16.mxu0 0
      %915 = vmatpush1.bf16.msra.mxu0 0
      %916 = vmatprep.subr.bf16.mxu0 0
      %917 = vmatpush1.bf16.msra.mxu0 0
      %918 = vmatprep.subr.bf16.mxu0 0
      %919 = vmatpush1.bf16.msra.mxu0 0
      %920 = vmatprep.subr.bf16.mxu0 0
      %921 = vmatpush1.bf16.msra.mxu0 0
      %922 = vmatprep.mubr.bf16.mxu0 0
      %923 = vmatmul.mubr.bf16.gmra.mrb[0].mxu0 %v874
      %v924 = vpop.f32.mrb[0].mxu0
      %v925 = vadd.f32 0.0, %v924
      %v926 = vpop.f32.mrb[0].mxu0
      %v927 = vpop.f32.mrb[0].mxu0
      %v928 = vadd.f32 0.0, %v927
      %v929 = vpop.f32.mrb[0].mxu0
      %930 = vmatprep.mubr.bf16.mxu0 0
      %931 = vmatmul.mubr.bf16.gmra.mrb[0].mxu0 %v875
      %v932 = vpop.f32.mrb[0].mxu0
      %v933 = vadd.f32 0.0, %v932
      %v934 = vpop.f32.mrb[0].mxu0
      %v935 = vpop.f32.mrb[0].mxu0
      %v936 = vadd.f32 0.0, %v935
      %v937 = vpop.f32.mrb[0].mxu0
      %938 = vmatprep.mubr.bf16.mxu0 0
      %939 = vmatmul.mubr.bf16.gmra.mrb[0].mxu0 %v876
      %v940 = vpop.f32.mrb[0].mxu0
      %v941 = vadd.f32 0.0, %v940
      %v942 = vpop.f32.mrb[0].mxu0
      %v943 = vpop.f32.mrb[0].mxu0
      %v944 = vadd.f32 0.0, %v943
      %v945 = vpop.f32.mrb[0].mxu0
      %946 = vmatprep.mubr.bf16.mxu0 0
      %947 = vmatmul.mubr.bf16.gmra.mrb[0].mxu0 %v877
      %v948 = vpop.f32.mrb[0].mxu0
      %v949 = vadd.f32 0.0, %v948
      %v950 = vpop.f32.mrb[0].mxu0
      %v951 = vpop.f32.mrb[0].mxu0
      %v952 = vadd.f32 0.0, %v951
      %v953 = vpop.f32.mrb[0].mxu0
      %954 = vmatprep.mubr.bf16.mxu0 0
      %955 = vmatmul.mubr.bf16.gmra.mrb[0].mxu0 %v878
      %v956 = vpop.f32.mrb[0].mxu0
      %v957 = vadd.f32 0.0, %v956
      %v958 = vpop.f32.mrb[0].mxu0
      %v959 = vpop.f32.mrb[0].mxu0
      %v960 = vadd.f32 0.0, %v959
      %v961 = vpop.f32.mrb[0].mxu0
      %962 = vmatprep.mubr.bf16.mxu0 0
      %963 = vmatmul.mubr.bf16.gmra.mrb[0].mxu0 %v879
      %v964 = vpop.f32.mrb[0].mxu0
      %v965 = vadd.f32 0.0, %v964
      %v966 = vpop.f32.mrb[0].mxu0
      %v967 = vpop.f32.mrb[0].mxu0
      %v968 = vadd.f32 0.0, %v967
      %v969 = vpop.f32.mrb[0].mxu0
      %970 = vmatprep.mubr.bf16.mxu0 0
      %971 = vmatmul.mubr.bf16.gmra.mrb[0].mxu0 %v880
      %v972 = vpop.f32.mrb[0].mxu0
      %v973 = vadd.f32 0.0, %v972
      %v974 = vpop.f32.mrb[0].mxu0
      %v975 = vpop.f32.mrb[0].mxu0
      %v976 = vadd.f32 0.0, %v975
      %v977 = vpop.f32.mrb[0].mxu0
      %978 = vmatprep.mubr.bf16.mxu0 0
      %979 = vmatmul.mubr.bf16.gmra.mrb[0].mxu0 %v881
      %v980 = vpop.f32.mrb[0].mxu0
      %v981 = vadd.f32 0.0, %v980
      %v982 = vpop.f32.mrb[0].mxu0
      %v983 = vpop.f32.mrb[0].mxu0
      %v984 = vadd.f32 0.0, %v983
      %v985 = vpop.f32.mrb[0].mxu0
      %986 = vdwg.mxu0
      %v987 = vld [vmem:[#allocation7] sm:$0xff]
      %v988 = vld [vmem:[#allocation7 + $0x8] sm:$0xff]
      %v989 = vld [vmem:[#allocation7 + $0x10] sm:$0xff]
      %v990 = vld [vmem:[#allocation7 + $0x18] sm:$0xff]
      %v991 = vld [vmem:[#allocation7 + $0x20] sm:$0xff]
      %v992 = vld [vmem:[#allocation7 + $0x28] sm:$0xff]
      %v993 = vld [vmem:[#allocation7 + $0x30] sm:$0xff]
      %v994 = vld [vmem:[#allocation7 + $0x38] sm:$0xff]
      %v995 = vld [vmem:[#allocation7 + $0x40] sm:$0xff]
      %v996 = vld [vmem:[#allocation7 + $0x48] sm:$0xff]
      %v997 = vld [vmem:[#allocation7 + $0x50] sm:$0xff]
      %v998 = vld [vmem:[#allocation7 + $0x58] sm:$0xff]
      %v999 = vld [vmem:[#allocation7 + $0x60] sm:$0xff]
      %v1000 = vld [vmem:[#allocation7 + $0x68] sm:$0xff]
      %v1001 = vld [vmem:[#allocation7 + $0x70] sm:$0xff]
      %v1002 = vld [vmem:[#allocation7 + $0x78] sm:$0xff]
      %v1003 = vld [vmem:[#allocation10] sm:$0xff]
      %v1004 = vld [vmem:[#allocation10 + $0x8] sm:$0xff]
      %v1005 = vld [vmem:[#allocation10 + $0x10] sm:$0xff]
      %v1006 = vld [vmem:[#allocation10 + $0x18] sm:$0xff]
      %v1007 = vld [vmem:[#allocation10 + $0x20] sm:$0xff]
      %v1008 = vld [vmem:[#allocation10 + $0x28] sm:$0xff]
      %v1009 = vld [vmem:[#allocation10 + $0x30] sm:$0xff]
      %v1010 = vld [vmem:[#allocation10 + $0x38] sm:$0xff]
      %v1011 = vld [vmem:[#allocation10 + $0x40] sm:$0xff]
      %v1012 = vld [vmem:[#allocation10 + $0x48] sm:$0xff]
      %v1013 = vld [vmem:[#allocation10 + $0x50] sm:$0xff]
      %v1014 = vld [vmem:[#allocation10 + $0x58] sm:$0xff]
      %v1015 = vld [vmem:[#allocation10 + $0x60] sm:$0xff]
      %v1016 = vld [vmem:[#allocation10 + $0x68] sm:$0xff]
      %v1017 = vld [vmem:[#allocation10 + $0x70] sm:$0xff]
      %v1018 = vld [vmem:[#allocation10 + $0x78] sm:$0xff]
      %v1019 = vadd.f32 %v1003, %v925
      %v1020 = vadd.f32 %v1004, %v928
      %v1021 = vadd.f32 %v1005, %v933
      %v1022 = vadd.f32 %v1006, %v936
      %v1023 = vadd.f32 %v1007, %v941
      %v1024 = vadd.f32 %v1008, %v944
      %v1025 = vadd.f32 %v1009, %v949
      %v1026 = vadd.f32 %v1010, %v952
      %v1027 = vadd.f32 %v1011, %v957
      %v1028 = vadd.f32 %v1012, %v960
      %v1029 = vadd.f32 %v1013, %v965
      %v1030 = vadd.f32 %v1014, %v968
      %v1031 = vadd.f32 %v1015, %v973
      %v1032 = vadd.f32 %v1016, %v976
      %v1033 = vadd.f32 %v1017, %v981
      %v1034 = vadd.f32 %v1018, %v984
      %v1035 = vmul.f32 %v1019, 0.125
      %v1036 = vmul.f32 %v1020, 0.125
      %v1037 = vmul.f32 %v1021, 0.125
      %v1038 = vmul.f32 %v1022, 0.125
      %v1039 = vmul.f32 %v1023, 0.125
      %v1040 = vmul.f32 %v1024, 0.125
      %v1041 = vmul.f32 %v1025, 0.125
      %v1042 = vmul.f32 %v1026, 0.125
      %v1043 = vmul.f32 %v1027, 0.125
      %v1044 = vmul.f32 %v1028, 0.125
      %v1045 = vmul.f32 %v1029, 0.125
      %v1046 = vmul.f32 %v1030, 0.125
      %v1047 = vmul.f32 %v1031, 0.125
      %v1048 = vmul.f32 %v1032, 0.125
      %v1049 = vmul.f32 %v1033, 0.125
      %v1050 = vmul.f32 %v1034, 0.125
      %v1051 = vadd.f32 %v987, %v1035
      %v1052 = vadd.f32 %v988, %v1036
      %v1053 = vadd.f32 %v989, %v1037
      %v1054 = vadd.f32 %v990, %v1038
      %v1055 = vadd.f32 %v991, %v1039
      %v1056 = vadd.f32 %v992, %v1040
      %v1057 = vadd.f32 %v993, %v1041
      %v1058 = vadd.f32 %v994, %v1042
      %v1059 = vadd.f32 %v995, %v1043
      %v1060 = vadd.f32 %v996, %v1044
      %v1061 = vadd.f32 %v997, %v1045
      %v1062 = vadd.f32 %v998, %v1046
      %v1063 = vadd.f32 %v999, %v1047
      %v1064 = vadd.f32 %v1000, %v1048
      %v1065 = vadd.f32 %v1001, %v1049
      %v1066 = vadd.f32 %v1002, %v1050
      %1067 = vst [vmem:[#allocation10] sm:$0xff] %v1051
      %1068 = vst [vmem:[#allocation10 + $0x8] sm:$0xff] %v1052
      %1069 = vst [vmem:[#allocation10 + $0x10] sm:$0xff] %v1053
      %1070 = vst [vmem:[#allocation10 + $0x18] sm:$0xff] %v1054
      %1071 = vst [vmem:[#allocation10 + $0x20] sm:$0xff] %v1055
      %1072 = vst [vmem:[#allocation10 + $0x28] sm:$0xff] %v1056
      %1073 = vst [vmem:[#allocation10 + $0x30] sm:$0xff] %v1057
      %1074 = vst [vmem:[#allocation10 + $0x38] sm:$0xff] %v1058
      %1075 = vst [vmem:[#allocation10 + $0x40] sm:$0xff] %v1059
      %1076 = vst [vmem:[#allocation10 + $0x48] sm:$0xff] %v1060
      %1077 = vst [vmem:[#allocation10 + $0x50] sm:$0xff] %v1061
      %1078 = vst [vmem:[#allocation10 + $0x58] sm:$0xff] %v1062
      %1079 = vst [vmem:[#allocation10 + $0x60] sm:$0xff] %v1063
      %1080 = vst [vmem:[#allocation10 + $0x68] sm:$0xff] %v1064
      %1081 = vst [vmem:[#allocation10 + $0x70] sm:$0xff] %v1065
      %1082 = vst [vmem:[#allocation10 + $0x78] sm:$0xff] %v1066
    $region29: #{tpu_custom_call.1} parent=1 // pred_fallthru
      _
    // Predicated region
    $region30: #{tpu_custom_call.1} parent=1 // pred_check
      _
    $region31: #{tpu_custom_call.1} parent=1 // pred_check_branch
      %1084 = sbr.rel (0) target = $region33
    $region32: #{tpu_custom_call.1} parent=1 // pred_region
      %s1086 = ssub.s32 2048, 2048
      %1087 = vsyncadd [#allocation9], %s1086
      %s1088 = sshll.u32 [#allocation10], 4
      %s1089 = int_to_ptr.vmem [resolvable:$true] %s1088
      %1094 = dma.vmem_to_hbm [thread:$0]  %s1089, 2048, %s2, [#allocation9], 128, 128, 8
    $region33: #{tpu_custom_call.1} parent=1 // pred_fallthru
      _
    // Predicated region
    $region34: #{tpu_custom_call.1} parent=1 // pred_check
      _
    $region35: #{tpu_custom_call.1} parent=1 // pred_check_branch
      %1096 = sbr.rel (0) target = $region37
    $region36: #{tpu_custom_call.1} parent=1 // pred_region
      %1097 = dma.done [#allocation9], 2048
    $region37: #{tpu_custom_call.1} parent=1 // pred_fallthru
      _
    %1098 = vsyncpa [#allocation8], 1
    %1099 = vsyncpa [#allocation9], 1
  %1100 = vsyncmov [#allocation6]
  %s1101 = vpop.sfrf %1100
  %p1102 = scmp.eq.s32.totalorder %s1101, 0
  %p1103 = pneg %p1102
  %1105 = shalt.err (%p1103)
  %s1106 = scalar_lea.sflag [#allocation6], 1
  %1107 = vsyncmov %s1106
  %s1108 = vpop.sfrf %1107
  %p1109 = scmp.eq.s32.totalorder %s1108, 0
  %p1110 = pneg %p1109
  %1112 = shalt.err (%p1110)

</llo_original>
